<compile_context>
chip_gen: v5e
topology: v5e:2x2
jax: 0.10.0
libtpu: 0.0.40
codegen_flags: <defaults>
</compile_context>

<pallas_src>
import functools
import math

import jax
import jax.numpy as jnp
from jax.experimental import pallas as pl
from jax.experimental.pallas import tpu as pltpu


def _layer_norm(x, gamma, beta, eps=1e-5):
    # x: (T, C) f32; gamma/beta: (1, C) f32  (biased variance, like nn.LayerNorm)
    mean = jnp.mean(x, axis=-1, keepdims=True)
    var = jnp.mean((x - mean) ** 2, axis=-1, keepdims=True)
    return (x - mean) * jax.lax.rsqrt(var + eps) * gamma + beta


def _block_kernel(x_ref,
                  ln1_g_ref, ln1_b_ref,
                  w_qkv_ref, b_qkv_ref,
                  w_proj_ref, b_proj_ref,
                  ln2_g_ref, ln2_b_ref,
                  w_fc_ref, b_fc_ref,
                  w_cproj_ref, b_cproj_ref,
                  o_ref,
                  q_sc, k_sc, v_sc, acc_sc,
                  *, n_head, tk):
    kb = pl.program_id(1)                 # key-block index (reduction axis)
    n_kb = pl.num_programs(1)
    T, C = x_ref.shape[1], x_ref.shape[2]
    hd = C // n_head
    bf16 = jnp.bfloat16
    f32 = jnp.float32

    # ---------- phase 0 (first key block): LN1 + fused QKV projection ----------
    @pl.when(kb == 0)
    def _():
        x = x_ref[0]                                               # (T, C) f32
        h = _layer_norm(x, ln1_g_ref[...], ln1_b_ref[...])
        # Single lane-dense MXU matmul; 1/sqrt(hd) already folded into w/b of q.
        qkv = jnp.dot(h.astype(bf16), w_qkv_ref[...],
                      preferred_element_type=f32) + b_qkv_ref[...]
        qkv = jnp.maximum(qkv, 0.0)                                # ReLU, f32 (T, 3C)

        def heads(m):                      # (T, C) -> (n_head, T, hd)
            return jnp.stack([m[:, i * hd:(i + 1) * hd] for i in range(n_head)],
                             axis=0)

        # Store MXU-operand copies in bf16 scratch (reused for every key block).
        q_sc[...] = heads(qkv[:, :C]).astype(bf16)
        k_sc[...] = heads(qkv[:, C:2 * C]).astype(bf16)
        v_sc[...] = heads(qkv[:, 2 * C:]).astype(bf16)
        acc_sc[...] = jnp.zeros_like(acc_sc)

    # ---------- every phase: one key block of causal ReLU attention ----------
    k0 = pl.multiple_of(kb * tk, tk)
    k_blk = k_sc[:, pl.ds(k0, tk), :]                              # (nh, tk, hd) bf16
    v_blk = v_sc[:, pl.ds(k0, tk), :]
    s = jnp.einsum('htd,hsd->hts', q_sc[...], k_blk,
                   preferred_element_type=f32)                     # (nh, T, tk) f32
    # In-kernel causal mask (row >= absolute col); cheap VPU work, no HBM traffic.
    row = jax.lax.broadcasted_iota(jnp.int32, (T, tk), 0)
    col = jax.lax.broadcasted_iota(jnp.int32, (T, tk), 1) + kb * tk
    mask = (row >= col).astype(f32)
    # masked_fill(-inf) then ReLU == ReLU then multiply by the 0/1 causal mask.
    p = jnp.maximum(s, 0.0) * mask[None]
    acc_sc[...] += jnp.einsum('hts,hsd->htd', p.astype(bf16), v_blk,
                              preferred_element_type=f32)          # (nh, T, hd) f32
    # TODO(synk): attn_dropout / resid_dropout / mlp dropout are identity in eval mode.

    # ---------- last phase: head concat + c_proj + residual + MLP ----------
    @pl.when(kb == n_kb - 1)
    def _():
        # Re-concatenate heads to the lane-dense (T, C) layout used by c_proj.
        y = jnp.concatenate([acc_sc[h] for h in range(n_head)], axis=-1)   # (T, C) f32
        attn_out = jnp.dot(y.astype(bf16), w_proj_ref[...],
                           preferred_element_type=f32) + b_proj_ref[...]
        x1 = x_ref[0] + attn_out                                   # residual 1, f32

        h2 = _layer_norm(x1, ln2_g_ref[...], ln2_b_ref[...])
        fc = jnp.dot(h2.astype(bf16), w_fc_ref[...],
                     preferred_element_type=f32) + b_fc_ref[...]
        fc = jnp.maximum(fc, 0.0)                                  # ReLU in f32
        mlp = jnp.dot(fc.astype(bf16), w_cproj_ref[...],
                      preferred_element_type=f32) + b_cproj_ref[...]
        o_ref[0] = x1 + mlp                                        # residual 2


def block_forward(x, params, n_head, tk_max=256):
    """x: (B, T, C) float32; params: dict of f32 weights; returns (B, T, C) f32."""
    B, T, C = x.shape
    hd = C // n_head
    bf16 = jnp.bfloat16

    # ---- wrapper-side (zero-cost) weight prep ----
    # Fold 1/sqrt(hd) into the q third of the fused QKV weight/bias (exact,
    # since a positive scale commutes with ReLU).
    scale = 1.0 / math.sqrt(hd)
    col_scale = jnp.concatenate([jnp.full((1, C), scale, jnp.float32),
                                 jnp.ones((1, 2 * C), jnp.float32)], axis=1)
    w_qkv = (params["w_attn"] * col_scale).astype(bf16)            # (C, 3C) bf16
    b_qkv = params["b_attn"] * col_scale                           # (1, 3C) f32

    # Key-block size: bounds the (n_head, T, tk) scores footprint at large T.
    tk = min(T, tk_max)
    if T % tk != 0:
        tk = T
    n_kb = T // tk

    weights = [
        params["ln1_g"], params["ln1_b"],
        w_qkv, b_qkv,
        params["w_proj"].astype(bf16), params["b_proj"],
        params["ln2_g"], params["ln2_b"],
        params["w_fc"].astype(bf16), params["b_fc"],
        params["w_cproj"].astype(bf16), params["b_cproj"],
    ]

    def full_spec(arr):
        nd = arr.ndim
        return pl.BlockSpec(arr.shape, lambda b, k, _nd=nd: (0,) * _nd)

    in_specs = [pl.BlockSpec((1, T, C), lambda b, k: (b, 0, 0))]   # one batch row / step
    in_specs += [full_spec(w) for w in weights]                    # grid-invariant

    kernel = functools.partial(_block_kernel, n_head=n_head, tk=tk)

    # Derive the scoped-VMEM limit from actual buffer sizes (don't hard-code).
    def nbytes(a):
        return int(a.size) * a.dtype.itemsize
    est = 2 * (sum(nbytes(w) for w in weights) + 2 * T * C * 4)    # pipelined in/out blocks
    est += 3 * n_head * T * hd * 2 + n_head * T * hd * 4           # q/k/v + acc scratch
    est += n_head * T * tk * 6 + T * 3 * C * 8                     # scores + qkv working set
    vmem_limit = min(max(int(est * 1.5) + (4 << 20), 8 << 20), 64 << 20)

    return pl.pallas_call(
        kernel,
        out_shape=jax.ShapeDtypeStruct((B, T, C), jnp.float32),
        grid=(B, n_kb),
        in_specs=in_specs,
        out_specs=pl.BlockSpec((1, T, C), lambda b, k: (b, 0, 0)),
        scratch_shapes=[
            pltpu.VMEM((n_head, T, hd), bf16),        # q (scaled)
            pltpu.VMEM((n_head, T, hd), bf16),        # k
            pltpu.VMEM((n_head, T, hd), bf16),        # v
            pltpu.VMEM((n_head, T, hd), jnp.float32), # y accumulator
        ],
        compiler_params=pltpu.CompilerParams(
            dimension_semantics=("parallel", "arbitrary"),
            vmem_limit_bytes=vmem_limit,
        ),
    )(x, *weights)


def init_params(key, n_embd):
    ks = jax.random.split(key, 4)
    std = 0.02
    return {
        "ln1_g": jnp.ones((1, n_embd), jnp.float32),
        "ln1_b": jnp.zeros((1, n_embd), jnp.float32),
        "w_attn": std * jax.random.normal(ks[0], (n_embd, 3 * n_embd), jnp.float32),
        "b_attn": jnp.zeros((1, 3 * n_embd), jnp.float32),
        "w_proj": std * jax.random.normal(ks[1], (n_embd, n_embd), jnp.float32),
        "b_proj": jnp.zeros((1, n_embd), jnp.float32),
        "ln2_g": jnp.ones((1, n_embd), jnp.float32),
        "ln2_b": jnp.zeros((1, n_embd), jnp.float32),
        # the reference module uses a 2x (not 4x) MLP expansion: c_fc = Linear(C, 2C)
        "w_fc": std * jax.random.normal(ks[2], (n_embd, 2 * n_embd), jnp.float32),
        "b_fc": jnp.zeros((1, 2 * n_embd), jnp.float32),
        "w_cproj": std * jax.random.normal(ks[3], (2 * n_embd, n_embd), jnp.float32),
        "b_cproj": jnp.zeros((1, n_embd), jnp.float32),
    }


def _reference_block(x, params, n_head):
    """Pure-JAX f32 reference mirroring the PyTorch module (eval mode)."""
    def ln(z, g, b, eps=1e-5):
        m = jnp.mean(z, -1, keepdims=True)
        v = jnp.mean((z - m) ** 2, -1, keepdims=True)
        return (z - m) * jax.lax.rsqrt(v + eps) * g + b

    B, T, C = x.shape
    hd = C // n_head
    h = ln(x, params["ln1_g"], params["ln1_b"])
    qkv = jax.nn.relu(h @ params["w_attn"] + params["b_attn"])
    q, k, v = jnp.split(qkv, 3, axis=-1)

    def heads(m):
        return m.reshape(B, T, n_head, hd).transpose(0, 2, 1, 3)

    q, k, v = heads(q), heads(k), heads(v)
    att = (q @ k.transpose(0, 1, 3, 2)) * (1.0 / math.sqrt(hd))
    mask = jnp.tril(jnp.ones((T, T), jnp.float32))
    att = jnp.where(mask == 0, -jnp.inf, att)
    att = jax.nn.relu(att)
    y = (att @ v).transpose(0, 2, 1, 3).reshape(B, T, C)
    y = y @ params["w_proj"] + params["b_proj"]
    x = x + y
    h2 = ln(x, params["ln2_g"], params["ln2_b"])
    m_ = jax.nn.relu(h2 @ params["w_fc"] + params["b_fc"])
    m_ = m_ @ params["w_cproj"] + params["b_cproj"]
    return x + m_


if __name__ == "__main__":
    # small config consistent with the module: B=2, T=block_size=8, n_embd=32, n_head=4
    B, T, C, NH = 2, 8, 32, 4
    key = jax.random.PRNGKey(0)
    kx, kp = jax.random.split(key)
    x = jax.random.normal(kx, (B, T, C), jnp.float32)
    params = init_params(kp, C)

    out = block_forward(x, params, NH)
    jax.block_until_ready(out)
    assert out.shape == (B, T, C)

    ref = _reference_block(x, params, NH)
    max_err = float(jnp.max(jnp.abs(out - ref)))
    assert max_err < 2e-2, f"max abs error {max_err}"
    print("KERNEL_OK")
</pallas_src>

<mosaic_0001>
module attributes {stable_mosaic.version = 11 : i64} {
  func.func @_block_kernel(%arg0: i32, %arg1: i32, %arg2: memref<1x8x32xf32, #tpu.memory_space<vmem>>, %arg3: memref<1x32xf32, #tpu.memory_space<vmem>>, %arg4: memref<1x32xf32, #tpu.memory_space<vmem>>, %arg5: memref<32x96xbf16, #tpu.memory_space<vmem>>, %arg6: memref<1x96xf32, #tpu.memory_space<vmem>>, %arg7: memref<32x32xbf16, #tpu.memory_space<vmem>>, %arg8: memref<1x32xf32, #tpu.memory_space<vmem>>, %arg9: memref<1x32xf32, #tpu.memory_space<vmem>>, %arg10: memref<1x32xf32, #tpu.memory_space<vmem>>, %arg11: memref<32x64xbf16, #tpu.memory_space<vmem>>, %arg12: memref<1x64xf32, #tpu.memory_space<vmem>>, %arg13: memref<64x32xbf16, #tpu.memory_space<vmem>>, %arg14: memref<1x32xf32, #tpu.memory_space<vmem>>, %arg15: memref<1x8x32xf32, #tpu.memory_space<vmem>>, %arg16: memref<4x8x8xbf16, #tpu.memory_space<vmem>>, %arg17: memref<4x8x8xbf16, #tpu.memory_space<vmem>>, %arg18: memref<4x8x8xbf16, #tpu.memory_space<vmem>>, %arg19: memref<4x8x8xf32, #tpu.memory_space<vmem>>) attributes {dimension_semantics = [#tpu.dimension_semantics<parallel>, #tpu.dimension_semantics<arbitrary>], iteration_bounds = array<i64: 2, 1>, scalar_prefetch = 0 : i64, scratch_operands = 4 : i64, tpu.core_type = #tpu.core_type<tc>, window_params = [{transform_indices = @transform_0, window_bounds = array<i64: 1, 8, 32>}, {pipeline_mode = #tpu.pipeline_mode<synchronous>, transform_indices = @transform_1, window_bounds = array<i64: 1, 32>}, {pipeline_mode = #tpu.pipeline_mode<synchronous>, transform_indices = @transform_2, window_bounds = array<i64: 1, 32>}, {pipeline_mode = #tpu.pipeline_mode<synchronous>, transform_indices = @transform_3, window_bounds = array<i64: 32, 96>}, {pipeline_mode = #tpu.pipeline_mode<synchronous>, transform_indices = @transform_4, window_bounds = array<i64: 1, 96>}, {pipeline_mode = #tpu.pipeline_mode<synchronous>, transform_indices = @transform_5, window_bounds = array<i64: 32, 32>}, {pipeline_mode = #tpu.pipeline_mode<synchronous>, transform_indices = @transform_6, window_bounds = array<i64: 1, 32>}, {pipeline_mode = #tpu.pipeline_mode<synchronous>, transform_indices = @transform_7, window_bounds = array<i64: 1, 32>}, {pipeline_mode = #tpu.pipeline_mode<synchronous>, transform_indices = @transform_8, window_bounds = array<i64: 1, 32>}, {pipeline_mode = #tpu.pipeline_mode<synchronous>, transform_indices = @transform_9, window_bounds = array<i64: 32, 64>}, {pipeline_mode = #tpu.pipeline_mode<synchronous>, transform_indices = @transform_10, window_bounds = array<i64: 1, 64>}, {pipeline_mode = #tpu.pipeline_mode<synchronous>, transform_indices = @transform_11, window_bounds = array<i64: 64, 32>}, {pipeline_mode = #tpu.pipeline_mode<synchronous>, transform_indices = @transform_12, window_bounds = array<i64: 1, 32>}, {transform_indices = @transform_13, window_bounds = array<i64: 1, 8, 32>}]} {
    %c0_i32 = arith.constant 0 : i32
    %0 = arith.cmpi eq, %arg1, %c0_i32 : i32
    %1 = arith.extui %0 : i1 to i32
    %c0_i32_0 = arith.constant 0 : i32
    %2 = arith.cmpi ne, %1, %c0_i32_0 : i32
    scf.if %2 {
      %c0_18 = arith.constant 0 : index
      %c0_19 = arith.constant 0 : index
      %c0_20 = arith.constant 0 : index
      %32 = vector.load %arg2[%c0_18, %c0_19, %c0_20] : memref<1x8x32xf32, #tpu.memory_space<vmem>>, vector<1x8x32xf32>
      %33 = vector.shape_cast %32 : vector<1x8x32xf32> to vector<8x32xf32>
      %c0_21 = arith.constant 0 : index
      %c0_22 = arith.constant 0 : index
      %34 = vector.load %arg3[%c0_21, %c0_22] : memref<1x32xf32, #tpu.memory_space<vmem>>, vector<1x32xf32>
      %c0_23 = arith.constant 0 : index
      %c0_24 = arith.constant 0 : index
      %35 = vector.load %arg4[%c0_23, %c0_24] : memref<1x32xf32, #tpu.memory_space<vmem>>, vector<1x32xf32>
      %cst_25 = arith.constant dense<0.000000e+00> : vector<8xf32>
      %36 = vector.multi_reduction <add>, %33, %cst_25 [1] : vector<8x32xf32> to vector<8xf32>
      %37 = vector.shape_cast %36 : vector<8xf32> to vector<8x1xf32>
      %cst_26 = arith.constant 3.200000e+01 : f32
      %38 = vector.broadcast %cst_26 : f32 to vector<8x1xf32>
      %39 = arith.divf %37, %38 : vector<8x1xf32>
      %40 = vector.broadcast %39 : vector<8x1xf32> to vector<8x32xf32>
      %41 = arith.subf %33, %40 : vector<8x32xf32>
      %42 = arith.mulf %41, %41 : vector<8x32xf32>
      %cst_27 = arith.constant dense<0.000000e+00> : vector<8xf32>
      %43 = vector.multi_reduction <add>, %42, %cst_27 [1] : vector<8x32xf32> to vector<8xf32>
      %44 = vector.shape_cast %43 : vector<8xf32> to vector<8x1xf32>
      %cst_28 = arith.constant 3.200000e+01 : f32
      %45 = vector.broadcast %cst_28 : f32 to vector<8x1xf32>
      %46 = arith.divf %44, %45 : vector<8x1xf32>
      %47 = vector.broadcast %39 : vector<8x1xf32> to vector<8x32xf32>
      %48 = arith.subf %33, %47 : vector<8x32xf32>
      %cst_29 = arith.constant 9.99999974E-6 : f32
      %49 = vector.broadcast %cst_29 : f32 to vector<8x1xf32>
      %50 = arith.addf %46, %49 : vector<8x1xf32>
      %51 = math.rsqrt %50 : vector<8x1xf32>
      %52 = vector.broadcast %51 : vector<8x1xf32> to vector<8x32xf32>
      %53 = arith.mulf %48, %52 : vector<8x32xf32>
      %54 = vector.broadcast %34 : vector<1x32xf32> to vector<8x32xf32>
      %55 = arith.mulf %53, %54 : vector<8x32xf32>
      %56 = vector.broadcast %35 : vector<1x32xf32> to vector<8x32xf32>
      %57 = arith.addf %55, %56 : vector<8x32xf32>
      %58 = arith.truncf %57 : vector<8x32xf32> to vector<8x32xbf16>
      %c0_30 = arith.constant 0 : index
      %c0_31 = arith.constant 0 : index
      %59 = vector.load %arg5[%c0_30, %c0_31] : memref<32x96xbf16, #tpu.memory_space<vmem>>, vector<32x96xbf16>
      %cst_32 = arith.constant dense<0.000000e+00> : vector<8x96xf32>
      %60 = tpu.matmul %58, %59, %cst_32 {dimension_numbers = #tpu.dot_dimension_numbers<[1], [0], [0], [1], [0, 0, 1, 1], [], []>} : vector<8x32xbf16>, vector<32x96xbf16>, vector<8x96xf32> -> vector<8x96xf32>
      %c0_33 = arith.constant 0 : index
      %c0_34 = arith.constant 0 : index
      %61 = vector.load %arg6[%c0_33, %c0_34] : memref<1x96xf32, #tpu.memory_space<vmem>>, vector<1x96xf32>
      %62 = vector.broadcast %61 : vector<1x96xf32> to vector<8x96xf32>
      %63 = arith.addf %60, %62 : vector<8x96xf32>
      %cst_35 = arith.constant 0.000000e+00 : f32
      %64 = vector.broadcast %cst_35 : f32 to vector<8x96xf32>
      %65 = arith.maximumf %63, %64 : vector<8x96xf32>
      %66 = vector.extract_strided_slice %65 {offsets = [0, 0], sizes = [8, 32], strides = [1, 1]} : vector<8x96xf32> to vector<8x32xf32>
      %67 = vector.extract_strided_slice %66 {offsets = [0, 0], sizes = [8, 8], strides = [1, 1]} : vector<8x32xf32> to vector<8x8xf32>
      %68 = vector.extract_strided_slice %66 {offsets = [0, 8], sizes = [8, 8], strides = [1, 1]} : vector<8x32xf32> to vector<8x8xf32>
      %69 = vector.extract_strided_slice %66 {offsets = [0, 16], sizes = [8, 8], strides = [1, 1]} : vector<8x32xf32> to vector<8x8xf32>
      %70 = vector.extract_strided_slice %66 {offsets = [0, 24], sizes = [8, 8], strides = [1, 1]} : vector<8x32xf32> to vector<8x8xf32>
      %71 = vector.shape_cast %67 : vector<8x8xf32> to vector<1x8x8xf32>
      %72 = vector.shape_cast %68 : vector<8x8xf32> to vector<1x8x8xf32>
      %73 = vector.shape_cast %69 : vector<8x8xf32> to vector<1x8x8xf32>
      %74 = vector.shape_cast %70 : vector<8x8xf32> to vector<1x8x8xf32>
      %75 = tpu.concatenate %71, %72, %73, %74 in 0 : vector<1x8x8xf32>, vector<1x8x8xf32>, vector<1x8x8xf32>, vector<1x8x8xf32> -> vector<4x8x8xf32>
      %76 = arith.truncf %75 : vector<4x8x8xf32> to vector<4x8x8xbf16>
      %c0_36 = arith.constant 0 : index
      %c0_37 = arith.constant 0 : index
      %c0_38 = arith.constant 0 : index
      %77 = vector.load %arg16[%c0_36, %c0_37, %c0_38] : memref<4x8x8xbf16, #tpu.memory_space<vmem>>, vector<4x8x8xbf16>
      tpu.vector_store %arg16[%c0_36, %c0_37, %c0_38], %76 {strides = array<i32>} : memref<4x8x8xbf16, #tpu.memory_space<vmem>>, vector<4x8x8xbf16>,
      %78 = vector.extract_strided_slice %65 {offsets = [0, 32], sizes = [8, 32], strides = [1, 1]} : vector<8x96xf32> to vector<8x32xf32>
      %79 = vector.extract_strided_slice %78 {offsets = [0, 0], sizes = [8, 8], strides = [1, 1]} : vector<8x32xf32> to vector<8x8xf32>
      %80 = vector.extract_strided_slice %78 {offsets = [0, 8], sizes = [8, 8], strides = [1, 1]} : vector<8x32xf32> to vector<8x8xf32>
      %81 = vector.extract_strided_slice %78 {offsets = [0, 16], sizes = [8, 8], strides = [1, 1]} : vector<8x32xf32> to vector<8x8xf32>
      %82 = vector.extract_strided_slice %78 {offsets = [0, 24], sizes = [8, 8], strides = [1, 1]} : vector<8x32xf32> to vector<8x8xf32>
      %83 = vector.shape_cast %79 : vector<8x8xf32> to vector<1x8x8xf32>
      %84 = vector.shape_cast %80 : vector<8x8xf32> to vector<1x8x8xf32>
      %85 = vector.shape_cast %81 : vector<8x8xf32> to vector<1x8x8xf32>
      %86 = vector.shape_cast %82 : vector<8x8xf32> to vector<1x8x8xf32>
      %87 = tpu.concatenate %83, %84, %85, %86 in 0 : vector<1x8x8xf32>, vector<1x8x8xf32>, vector<1x8x8xf32>, vector<1x8x8xf32> -> vector<4x8x8xf32>
      %88 = arith.truncf %87 : vector<4x8x8xf32> to vector<4x8x8xbf16>
      %c0_39 = arith.constant 0 : index
      %c0_40 = arith.constant 0 : index
      %c0_41 = arith.constant 0 : index
      %89 = vector.load %arg17[%c0_39, %c0_40, %c0_41] : memref<4x8x8xbf16, #tpu.memory_space<vmem>>, vector<4x8x8xbf16>
      tpu.vector_store %arg17[%c0_39, %c0_40, %c0_41], %88 {strides = array<i32>} : memref<4x8x8xbf16, #tpu.memory_space<vmem>>, vector<4x8x8xbf16>,
      %90 = vector.extract_strided_slice %65 {offsets = [0, 64], sizes = [8, 32], strides = [1, 1]} : vector<8x96xf32> to vector<8x32xf32>
      %91 = vector.extract_strided_slice %90 {offsets = [0, 0], sizes = [8, 8], strides = [1, 1]} : vector<8x32xf32> to vector<8x8xf32>
      %92 = vector.extract_strided_slice %90 {offsets = [0, 8], sizes = [8, 8], strides = [1, 1]} : vector<8x32xf32> to vector<8x8xf32>
      %93 = vector.extract_strided_slice %90 {offsets = [0, 16], sizes = [8, 8], strides = [1, 1]} : vector<8x32xf32> to vector<8x8xf32>
      %94 = vector.extract_strided_slice %90 {offsets = [0, 24], sizes = [8, 8], strides = [1, 1]} : vector<8x32xf32> to vector<8x8xf32>
      %95 = vector.shape_cast %91 : vector<8x8xf32> to vector<1x8x8xf32>
      %96 = vector.shape_cast %92 : vector<8x8xf32> to vector<1x8x8xf32>
      %97 = vector.shape_cast %93 : vector<8x8xf32> to vector<1x8x8xf32>
      %98 = vector.shape_cast %94 : vector<8x8xf32> to vector<1x8x8xf32>
      %99 = tpu.concatenate %95, %96, %97, %98 in 0 : vector<1x8x8xf32>, vector<1x8x8xf32>, vector<1x8x8xf32>, vector<1x8x8xf32> -> vector<4x8x8xf32>
      %100 = arith.truncf %99 : vector<4x8x8xf32> to vector<4x8x8xbf16>
      %c0_42 = arith.constant 0 : index
      %c0_43 = arith.constant 0 : index
      %c0_44 = arith.constant 0 : index
      %101 = vector.load %arg18[%c0_42, %c0_43, %c0_44] : memref<4x8x8xbf16, #tpu.memory_space<vmem>>, vector<4x8x8xbf16>
      tpu.vector_store %arg18[%c0_42, %c0_43, %c0_44], %100 {strides = array<i32>} : memref<4x8x8xbf16, #tpu.memory_space<vmem>>, vector<4x8x8xbf16>,
      %cst_45 = arith.constant 0.000000e+00 : f32
      %102 = vector.broadcast %cst_45 : f32 to vector<4x8x8xf32>
      %c0_46 = arith.constant 0 : index
      %c0_47 = arith.constant 0 : index
      %c0_48 = arith.constant 0 : index
      %103 = vector.load %arg19[%c0_46, %c0_47, %c0_48] : memref<4x8x8xf32, #tpu.memory_space<vmem>>, vector<4x8x8xf32>
      tpu.vector_store %arg19[%c0_46, %c0_47, %c0_48], %102 {strides = array<i32>} : memref<4x8x8xf32, #tpu.memory_space<vmem>>, vector<4x8x8xf32>,
    } else {
    }
    %c8_i32 = arith.constant 8 : i32
    %3 = arith.muli %arg1, %c8_i32 : i32
    %4 = tpu.assume_multiple %3, 8 : i32
    %c0 = arith.constant 0 : index
    %5 = arith.index_cast %4 : i32 to index
    %c0_1 = arith.constant 0 : index
    %6 = vector.load %arg17[%c0, %5, %c0_1] : memref<4x8x8xbf16, #tpu.memory_space<vmem>>, vector<4x8x8xbf16>
    %c0_2 = arith.constant 0 : index
    %7 = arith.index_cast %4 : i32 to index
    %c0_3 = arith.constant 0 : index
    %8 = vector.load %arg18[%c0_2, %7, %c0_3] : memref<4x8x8xbf16, #tpu.memory_space<vmem>>, vector<4x8x8xbf16>
    %c0_4 = arith.constant 0 : index
    %c0_5 = arith.constant 0 : index
    %c0_6 = arith.constant 0 : index
    %9 = vector.load %arg16[%c0_4, %c0_5, %c0_6] : memref<4x8x8xbf16, #tpu.memory_space<vmem>>, vector<4x8x8xbf16>
    "tpu.trace_start"() <{level = 10 : i32, message = "htd,hsd->hts"}> : () -> ()
    %cst = arith.constant dense<0.000000e+00> : vector<4x8x8xf32>
    %10 = tpu.matmul %9, %6, %cst {dimension_numbers = #tpu.dot_dimension_numbers<[2], [2], [1], [1], [0, 0, 0, 1, 1, 1], [0], [0]>} : vector<4x8x8xbf16>, vector<4x8x8xbf16>, vector<4x8x8xf32> -> vector<4x8x8xf32>
    "tpu.trace_stop"() : () -> ()
    %11 = tpu.iota {dimensions = array<i32: 0>} : vector<8x8xi32>
    %12 = tpu.iota {dimensions = array<i32: 1>} : vector<8x8xi32>
    %c8_i32_7 = arith.constant 8 : i32
    %13 = arith.muli %arg1, %c8_i32_7 : i32
    %14 = vector.broadcast %13 : i32 to vector<8x8xi32>
    %15 = arith.addi %12, %14 : vector<8x8xi32>
    %16 = arith.cmpi sge, %11, %15 : vector<8x8xi32>
    %17 = arith.extui %16 : vector<8x8xi1> to vector<8x8xi32>
    %18 = arith.sitofp %17 : vector<8x8xi32> to vector<8x8xf32>
    %cst_8 = arith.constant 0.000000e+00 : f32
    %19 = vector.broadcast %cst_8 : f32 to vector<4x8x8xf32>
    %20 = arith.maximumf %10, %19 : vector<4x8x8xf32>
    %21 = vector.shape_cast %18 : vector<8x8xf32> to vector<1x8x8xf32>
    %22 = vector.broadcast %21 : vector<1x8x8xf32> to vector<4x8x8xf32>
    %23 = arith.mulf %20, %22 : vector<4x8x8xf32>
    %c0_9 = arith.constant 0 : index
    %c0_10 = arith.constant 0 : index
    %c0_11 = arith.constant 0 : index
    %24 = vector.load %arg19[%c0_9, %c0_10, %c0_11] : memref<4x8x8xf32, #tpu.memory_space<vmem>>, vector<4x8x8xf32>
    %25 = arith.truncf %23 : vector<4x8x8xf32> to vector<4x8x8xbf16>
    "tpu.trace_start"() <{level = 10 : i32, message = "hts,hsd->htd"}> : () -> ()
    %cst_12 = arith.constant dense<0.000000e+00> : vector<4x8x8xf32>
    %26 = tpu.matmul %25, %8, %cst_12 {dimension_numbers = #tpu.dot_dimension_numbers<[2], [1], [1], [2], [0, 0, 0, 1, 1, 2], [0], [0]>} : vector<4x8x8xbf16>, vector<4x8x8xbf16>, vector<4x8x8xf32> -> vector<4x8x8xf32>
    "tpu.trace_stop"() : () -> ()
    %27 = arith.addf %24, %26 : vector<4x8x8xf32>
    %c0_13 = arith.constant 0 : index
    %c0_14 = arith.constant 0 : index
    %c0_15 = arith.constant 0 : index
    %28 = vector.load %arg19[%c0_13, %c0_14, %c0_15] : memref<4x8x8xf32, #tpu.memory_space<vmem>>, vector<4x8x8xf32>
    tpu.vector_store %arg19[%c0_13, %c0_14, %c0_15], %27 {strides = array<i32>} : memref<4x8x8xf32, #tpu.memory_space<vmem>>, vector<4x8x8xf32>,
    %c0_i32_16 = arith.constant 0 : i32
    %29 = arith.cmpi eq, %arg1, %c0_i32_16 : i32
    %30 = arith.extui %29 : i1 to i32
    %c0_i32_17 = arith.constant 0 : i32
    %31 = arith.cmpi ne, %30, %c0_i32_17 : i32
    scf.if %31 {
      %c0_18 = arith.constant 0 : index
      %c0_19 = arith.constant 0 : index
      %c0_20 = arith.constant 0 : index
      %32 = vector.load %arg19[%c0_18, %c0_19, %c0_20] : memref<4x8x8xf32, #tpu.memory_space<vmem>>, vector<1x8x8xf32>
      %33 = vector.shape_cast %32 : vector<1x8x8xf32> to vector<8x8xf32>
      %c1 = arith.constant 1 : index
      %c0_21 = arith.constant 0 : index
      %c0_22 = arith.constant 0 : index
      %34 = vector.load %arg19[%c1, %c0_21, %c0_22] : memref<4x8x8xf32, #tpu.memory_space<vmem>>, vector<1x8x8xf32>
      %35 = vector.shape_cast %34 : vector<1x8x8xf32> to vector<8x8xf32>
      %c2 = arith.constant 2 : index
      %c0_23 = arith.constant 0 : index
      %c0_24 = arith.constant 0 : index
      %36 = vector.load %arg19[%c2, %c0_23, %c0_24] : memref<4x8x8xf32, #tpu.memory_space<vmem>>, vector<1x8x8xf32>
      %37 = vector.shape_cast %36 : vector<1x8x8xf32> to vector<8x8xf32>
      %c3 = arith.constant 3 : index
      %c0_25 = arith.constant 0 : index
      %c0_26 = arith.constant 0 : index
      %38 = vector.load %arg19[%c3, %c0_25, %c0_26] : memref<4x8x8xf32, #tpu.memory_space<vmem>>, vector<1x8x8xf32>
      %39 = vector.shape_cast %38 : vector<1x8x8xf32> to vector<8x8xf32>
      %40 = tpu.concatenate %33, %35, %37, %39 in 1 : vector<8x8xf32>, vector<8x8xf32>, vector<8x8xf32>, vector<8x8xf32> -> vector<8x32xf32>
      %41 = arith.truncf %40 : vector<8x32xf32> to vector<8x32xbf16>
      %c0_27 = arith.constant 0 : index
      %c0_28 = arith.constant 0 : index
      %42 = vector.load %arg7[%c0_27, %c0_28] : memref<32x32xbf16, #tpu.memory_space<vmem>>, vector<32x32xbf16>
      %cst_29 = arith.constant dense<0.000000e+00> : vector<8x32xf32>
      %43 = tpu.matmul %41, %42, %cst_29 {dimension_numbers = #tpu.dot_dimension_numbers<[1], [0], [0], [1], [0, 0, 1, 1], [], []>} : vector<8x32xbf16>, vector<32x32xbf16>, vector<8x32xf32> -> vector<8x32xf32>
      %c0_30 = arith.constant 0 : index
      %c0_31 = arith.constant 0 : index
      %44 = vector.load %arg8[%c0_30, %c0_31] : memref<1x32xf32, #tpu.memory_space<vmem>>, vector<1x32xf32>
      %45 = vector.broadcast %44 : vector<1x32xf32> to vector<8x32xf32>
      %46 = arith.addf %43, %45 : vector<8x32xf32>
      %c0_32 = arith.constant 0 : index
      %c0_33 = arith.constant 0 : index
      %c0_34 = arith.constant 0 : index
      %47 = vector.load %arg2[%c0_32, %c0_33, %c0_34] : memref<1x8x32xf32, #tpu.memory_space<vmem>>, vector<1x8x32xf32>
      %48 = vector.shape_cast %47 : vector<1x8x32xf32> to vector<8x32xf32>
      %49 = arith.addf %48, %46 : vector<8x32xf32>
      %c0_35 = arith.constant 0 : index
      %c0_36 = arith.constant 0 : index
      %50 = vector.load %arg9[%c0_35, %c0_36] : memref<1x32xf32, #tpu.memory_space<vmem>>, vector<1x32xf32>
      %c0_37 = arith.constant 0 : index
      %c0_38 = arith.constant 0 : index
      %51 = vector.load %arg10[%c0_37, %c0_38] : memref<1x32xf32, #tpu.memory_space<vmem>>, vector<1x32xf32>
      %cst_39 = arith.constant dense<0.000000e+00> : vector<8xf32>
      %52 = vector.multi_reduction <add>, %49, %cst_39 [1] : vector<8x32xf32> to vector<8xf32>
      %53 = vector.shape_cast %52 : vector<8xf32> to vector<8x1xf32>
      %cst_40 = arith.constant 3.200000e+01 : f32
      %54 = vector.broadcast %cst_40 : f32 to vector<8x1xf32>
      %55 = arith.divf %53, %54 : vector<8x1xf32>
      %56 = vector.broadcast %55 : vector<8x1xf32> to vector<8x32xf32>
      %57 = arith.subf %49, %56 : vector<8x32xf32>
      %58 = arith.mulf %57, %57 : vector<8x32xf32>
      %cst_41 = arith.constant dense<0.000000e+00> : vector<8xf32>
      %59 = vector.multi_reduction <add>, %58, %cst_41 [1] : vector<8x32xf32> to vector<8xf32>
      %60 = vector.shape_cast %59 : vector<8xf32> to vector<8x1xf32>
      %cst_42 = arith.constant 3.200000e+01 : f32
      %61 = vector.broadcast %cst_42 : f32 to vector<8x1xf32>
      %62 = arith.divf %60, %61 : vector<8x1xf32>
      %63 = vector.broadcast %55 : vector<8x1xf32> to vector<8x32xf32>
      %64 = arith.subf %49, %63 : vector<8x32xf32>
      %cst_43 = arith.constant 9.99999974E-6 : f32
      %65 = vector.broadcast %cst_43 : f32 to vector<8x1xf32>
      %66 = arith.addf %62, %65 : vector<8x1xf32>
      %67 = math.rsqrt %66 : vector<8x1xf32>
      %68 = vector.broadcast %67 : vector<8x1xf32> to vector<8x32xf32>
      %69 = arith.mulf %64, %68 : vector<8x32xf32>
      %70 = vector.broadcast %50 : vector<1x32xf32> to vector<8x32xf32>
      %71 = arith.mulf %69, %70 : vector<8x32xf32>
      %72 = vector.broadcast %51 : vector<1x32xf32> to vector<8x32xf32>
      %73 = arith.addf %71, %72 : vector<8x32xf32>
      %74 = arith.truncf %73 : vector<8x32xf32> to vector<8x32xbf16>
      %c0_44 = arith.constant 0 : index
      %c0_45 = arith.constant 0 : index
      %75 = vector.load %arg11[%c0_44, %c0_45] : memref<32x64xbf16, #tpu.memory_space<vmem>>, vector<32x64xbf16>
      %cst_46 = arith.constant dense<0.000000e+00> : vector<8x64xf32>
      %76 = tpu.matmul %74, %75, %cst_46 {dimension_numbers = #tpu.dot_dimension_numbers<[1], [0], [0], [1], [0, 0, 1, 1], [], []>} : vector<8x32xbf16>, vector<32x64xbf16>, vector<8x64xf32> -> vector<8x64xf32>
      %c0_47 = arith.constant 0 : index
      %c0_48 = arith.constant 0 : index
      %77 = vector.load %arg12[%c0_47, %c0_48] : memref<1x64xf32, #tpu.memory_space<vmem>>, vector<1x64xf32>
      %78 = vector.broadcast %77 : vector<1x64xf32> to vector<8x64xf32>
      %79 = arith.addf %76, %78 : vector<8x64xf32>
      %cst_49 = arith.constant 0.000000e+00 : f32
      %80 = vector.broadcast %cst_49 : f32 to vector<8x64xf32>
      %81 = arith.maximumf %79, %80 : vector<8x64xf32>
      %82 = arith.truncf %81 : vector<8x64xf32> to vector<8x64xbf16>
      %c0_50 = arith.constant 0 : index
      %c0_51 = arith.constant 0 : index
      %83 = vector.load %arg13[%c0_50, %c0_51] : memref<64x32xbf16, #tpu.memory_space<vmem>>, vector<64x32xbf16>
      %cst_52 = arith.constant dense<0.000000e+00> : vector<8x32xf32>
      %84 = tpu.matmul %82, %83, %cst_52 {dimension_numbers = #tpu.dot_dimension_numbers<[1], [0], [0], [1], [0, 0, 1, 1], [], []>} : vector<8x64xbf16>, vector<64x32xbf16>, vector<8x32xf32> -> vector<8x32xf32>
      %c0_53 = arith.constant 0 : index
      %c0_54 = arith.constant 0 : index
      %85 = vector.load %arg14[%c0_53, %c0_54] : memref<1x32xf32, #tpu.memory_space<vmem>>, vector<1x32xf32>
      %86 = vector.broadcast %85 : vector<1x32xf32> to vector<8x32xf32>
      %87 = arith.addf %84, %86 : vector<8x32xf32>
      %88 = arith.addf %49, %87 : vector<8x32xf32>
      %c0_55 = arith.constant 0 : index
      %c0_56 = arith.constant 0 : index
      %c0_57 = arith.constant 0 : index
      %89 = vector.load %arg15[%c0_55, %c0_56, %c0_57] : memref<1x8x32xf32, #tpu.memory_space<vmem>>, vector<1x8x32xf32>
      %90 = vector.shape_cast %89 : vector<1x8x32xf32> to vector<8x32xf32>
      %91 = vector.shape_cast %88 : vector<8x32xf32> to vector<1x8x32xf32>
      tpu.vector_store %arg15[%c0_55, %c0_56, %c0_57], %91 {strides = array<i32>} : memref<1x8x32xf32, #tpu.memory_space<vmem>>, vector<1x8x32xf32>,
    } else {
    }
    return
  }
  func.func @transform_0(%arg0: i32, %arg1: i32) -> (i32, i32, i32) {
    %c0_i32 = arith.constant 0 : i32
    %c0_i32_0 = arith.constant 0 : i32
    %c0_i32_1 = arith.constant 0 : i32
    return %arg0, %c0_i32, %c0_i32_0 : i32, i32, i32
  }
  func.func @transform_1(%arg0: i32, %arg1: i32) -> (i32, i32) {
    %c0_i32 = arith.constant 0 : i32
    %c0_i32_0 = arith.constant 0 : i32
    %c0_i32_1 = arith.constant 0 : i32
    return %c0_i32, %c0_i32_0 : i32, i32
  }
  func.func @transform_2(%arg0: i32, %arg1: i32) -> (i32, i32) {
    %c0_i32 = arith.constant 0 : i32
    %c0_i32_0 = arith.constant 0 : i32
    %c0_i32_1 = arith.constant 0 : i32
    return %c0_i32, %c0_i32_0 : i32, i32
  }
  func.func @transform_3(%arg0: i32, %arg1: i32) -> (i32, i32) {
    %c0_i32 = arith.constant 0 : i32
    %c0_i32_0 = arith.constant 0 : i32
    %c0_i32_1 = arith.constant 0 : i32
    return %c0_i32, %c0_i32_0 : i32, i32
  }
  func.func @transform_4(%arg0: i32, %arg1: i32) -> (i32, i32) {
    %c0_i32 = arith.constant 0 : i32
    %c0_i32_0 = arith.constant 0 : i32
    %c0_i32_1 = arith.constant 0 : i32
    return %c0_i32, %c0_i32_0 : i32, i32
  }
  func.func @transform_5(%arg0: i32, %arg1: i32) -> (i32, i32) {
    %c0_i32 = arith.constant 0 : i32
    %c0_i32_0 = arith.constant 0 : i32
    %c0_i32_1 = arith.constant 0 : i32
    return %c0_i32, %c0_i32_0 : i32, i32
  }
  func.func @transform_6(%arg0: i32, %arg1: i32) -> (i32, i32) {
    %c0_i32 = arith.constant 0 : i32
    %c0_i32_0 = arith.constant 0 : i32
    %c0_i32_1 = arith.constant 0 : i32
    return %c0_i32, %c0_i32_0 : i32, i32
  }
  func.func @transform_7(%arg0: i32, %arg1: i32) -> (i32, i32) {
    %c0_i32 = arith.constant 0 : i32
    %c0_i32_0 = arith.constant 0 : i32
    %c0_i32_1 = arith.constant 0 : i32
    return %c0_i32, %c0_i32_0 : i32, i32
  }
  func.func @transform_8(%arg0: i32, %arg1: i32) -> (i32, i32) {
    %c0_i32 = arith.constant 0 : i32
    %c0_i32_0 = arith.constant 0 : i32
    %c0_i32_1 = arith.constant 0 : i32
    return %c0_i32, %c0_i32_0 : i32, i32
  }
  func.func @transform_9(%arg0: i32, %arg1: i32) -> (i32, i32) {
    %c0_i32 = arith.constant 0 : i32
    %c0_i32_0 = arith.constant 0 : i32
    %c0_i32_1 = arith.constant 0 : i32
    return %c0_i32, %c0_i32_0 : i32, i32
  }
  func.func @transform_10(%arg0: i32, %arg1: i32) -> (i32, i32) {
    %c0_i32 = arith.constant 0 : i32
    %c0_i32_0 = arith.constant 0 : i32
    %c0_i32_1 = arith.constant 0 : i32
    return %c0_i32, %c0_i32_0 : i32, i32
  }
  func.func @transform_11(%arg0: i32, %arg1: i32) -> (i32, i32) {
    %c0_i32 = arith.constant 0 : i32
    %c0_i32_0 = arith.constant 0 : i32
    %c0_i32_1 = arith.constant 0 : i32
    return %c0_i32, %c0_i32_0 : i32, i32
  }
  func.func @transform_12(%arg0: i32, %arg1: i32) -> (i32, i32) {
    %c0_i32 = arith.constant 0 : i32
    %c0_i32_0 = arith.constant 0 : i32
    %c0_i32_1 = arith.constant 0 : i32
    return %c0_i32, %c0_i32_0 : i32, i32
  }
  func.func @transform_13(%arg0: i32, %arg1: i32) -> (i32, i32, i32) {
    %c0_i32 = arith.constant 0 : i32
    %c0_i32_0 = arith.constant 0 : i32
    %c0_i32_1 = arith.constant 0 : i32
    return %arg0, %c0_i32, %c0_i32_0 : i32, i32, i32
  }
}

</mosaic_0001>

<llo_original>
// kernel: tpu_custom_call.1
$region0: #{tpu_custom_call.1}
  #allocation0 [shape = 'u32[]', space=smem, size = 0x4, offset = 0x4, fixed_abs, tag = 'smem constant byte address 0x4 - core index']
  #allocation1 [shape = 'u32[72,128]{1,0:T(1,128)}', space=vmem, size = 0x9000, scoped, tag = 'internal scratch']
  #allocation2 [shape = 'bf16[4,8,8]{2,1,0:T(8,128)(2,1)}', space=vmem, size = 0x2000, scoped, tag = 'scratch operand']
  #allocation3 [shape = 'bf16[4,8,8]{2,1,0:T(8,128)(2,1)}', space=vmem, size = 0x2000, scoped, tag = 'scratch operand']
  #allocation4 [shape = 'bf16[4,8,8]{2,1,0:T(8,128)(2,1)}', space=vmem, size = 0x2000, scoped, tag = 'scratch operand']
  #allocation5 [shape = 'f32[4,8,8]{2,1,0:T(8,128)}', space=vmem, size = 0x4000, scoped, tag = 'scratch operand']
  %s0 = inlined_call_operand.vmem [shape: f32[2,8,32], index: 0, kind: input, shape index: {}]
  %s1 = inlined_call_operand.hbm [shape: f32[1,32], index: 1, kind: input, shape index: {}]
  %s2 = inlined_call_operand.vmem [shape: f32[1,32], index: 2, kind: input, shape index: {}]
  %s3 = inlined_call_operand.vmem [shape: bf16[32,96], index: 3, kind: input, shape index: {}]
  %s4 = inlined_call_operand.vmem [shape: f32[1,96], index: 4, kind: input, shape index: {}]
  %s5 = inlined_call_operand.vmem [shape: bf16[32,32], index: 5, kind: input, shape index: {}]
  %s6 = inlined_call_operand.vmem [shape: f32[1,32], index: 6, kind: input, shape index: {}]
  %s7 = inlined_call_operand.vmem [shape: f32[1,32], index: 7, kind: input, shape index: {}]
  %s8 = inlined_call_operand.vmem [shape: f32[1,32], index: 8, kind: input, shape index: {}]
  %s9 = inlined_call_operand.hbm [shape: bf16[32,64], index: 9, kind: input, shape index: {}]
  %s10 = inlined_call_operand.vmem [shape: f32[1,64], index: 10, kind: input, shape index: {}]
  %s11 = inlined_call_operand.vmem [shape: bf16[64,32], index: 11, kind: input, shape index: {}]
  %s12 = inlined_call_operand.vmem [shape: f32[1,32], index: 12, kind: input, shape index: {}]
  %s13 = inlined_call_operand.hbm [shape: f32[2,8,32], index: 13, kind: output, shape index: {}]
  %s14 = sld [smem:[#allocation0]]
  $region101: #{tpu_custom_call.1} parent=0
    _
  %s16 = ssub.s32 1, %s14
  %s17 = scalar_select 0, %s16, %s14
  $region1: #{tpu_custom_call.1} parent=0
    #allocation6 [shape = 'u8[512]{0}', space=vmem, size = 0x400, scoped, tag = 'input window, operand 1, single buffered']
    #allocation7 [shape = 's32[2]{0}', space=sflag, size = 0x8, scoped, tag = 'scoped memory for tpu_custom_call.1']
    #allocation8 [shape = 's32[2]{0}', space=sflag, size = 0x8, scoped, tag = 'scoped memory for tpu_custom_call.1']
    #allocation9 [shape = 'u8[8192]{0}', space=vmem, size = 0x2000, scoped, tag = 'input window, operand 9, single buffered']
    #allocation10 [shape = 's32[1]{0}', space=sflag, size = 0x4, scoped, tag = 'scoped memory for tpu_custom_call.1']
    #allocation11 [shape = 'u8[8192]{0}', space=vmem, size = 0x2000, scoped, tag = 'output window, operand 0']
    %18 = vsyncpa [#allocation7], 0
    %19 = vsyncpa [#allocation10], 0
    %20 = vsyncpa [#allocation8], 0
    %s21 = scalar_lea.sflag [#allocation8], 1
    %22 = vsyncpa %s21, 0
    loop: start=0, step=1, limit=4
    $region2: #{tpu_custom_call.1} parent=1 // loop_pre_header
      _
    $region3: #{tpu_custom_call.1} parent=1 // loop_header
      %s24 = sphi 0, %s28
      %p25 = scmp.ge.s32.totalorder %s24, 4
      %s31 = sphi 0, %s43
      %s32 = sphi 0, %s39
      %s33 = sphi 0, %s31
      %s34 = sphi 0, %s32
      %s35 = sphi 0, %s33
      %s36 = sphi 0, %s34
      %s46 = sphi 0, %s48
      %s49 = sphi 0, %s46
      %s50 = sphi 0, %s49
      %s66 = sphi 0, %s50
      %s70 = sphi 0, %s70
      %s72 = sphi 0, %s70
      %s73 = sphi 0, %s72
      %s87 = sphi 0, %s73
      %s91 = sphi 0, %s91
      %s93 = sphi 0, %s91
      %s94 = sphi 0, %s93
      %s108 = sphi 0, %s94
      %s112 = sphi 0, %s112
      %s114 = sphi 0, %s112
      %s115 = sphi 0, %s114
      %s129 = sphi 0, %s115
      %s133 = sphi 0, %s133
      %s135 = sphi 0, %s133
      %s136 = sphi 0, %s135
      %s150 = sphi 0, %s136
      %s154 = sphi 0, %s154
      %s156 = sphi 0, %s154
      %s157 = sphi 0, %s156
      %s171 = sphi 0, %s157
      %s175 = sphi 0, %s175
      %s177 = sphi 0, %s175
      %s178 = sphi 0, %s177
      %s192 = sphi 0, %s178
      %s196 = sphi 0, %s196
      %s198 = sphi 0, %s196
      %s199 = sphi 0, %s198
      %s213 = sphi 0, %s199
      %s217 = sphi 0, %s217
      %s219 = sphi 0, %s217
      %s220 = sphi 0, %s219
      %s234 = sphi 0, %s220
      %s238 = sphi 0, %s238
      %s240 = sphi 0, %s238
      %s241 = sphi 0, %s240
      %s255 = sphi 0, %s241
      %s259 = sphi 0, %s259
      %s261 = sphi 0, %s259
      %s262 = sphi 0, %s261
      %s276 = sphi 0, %s262
      %s280 = sphi 0, %s280
      %s282 = sphi 0, %s280
      %s283 = sphi 0, %s282
      %s297 = sphi 0, %s283
      %s301 = sphi 0, %s301
      %s303 = sphi 0, %s301
      %s304 = sphi 0, %s303
      %s318 = sphi 0, %s304
      %s324 = sphi 0, %s326
      %s327 = sphi 0, %s324
      %s328 = sphi 0, %s327
      %s344 = sphi 0, %s328
    $region4: #{tpu_custom_call.1} parent=1 // loop_header_branch
      %27 = sbr.rel (%p25) target = $region8
    $region5: #{tpu_custom_call.1} parent=1 // loop_body
      %s29 = ssub.s32 %s24, 1
      %s30 = ssub.s32 %s24, 2
      %s37 = sadd.s32 1, %s32
      %p38 = scmp.ge.s32.totalorder %s37, 1
      %s39 = scalar_select %p38, 0, %s37
      %s40 = sadd.s32 1, %s31
      %s41 = scalar_select %p38, %s40, %s31
      %p42 = scmp.ge.s32.totalorder %s41, 2
      %s43 = scalar_select %p42, 0, %s41
      %s44 = ssub.s32 %s31, %s43
      %p45 = scmp.eq.s32.totalorder %s44, 0
      %s47 = sadd.s32 %s46, 1
      %s48 = scalar_select %p45, %s46, %s47
      %p51 = pneg %p45
      %p52 = scmp.eq.s32.totalorder %s24, 1
      %p53 = por %p51, %p52
      %p54 = scmp.ne.s32.totalorder %s46, %s49
      %p55 = scmp.eq.s32.totalorder %s24, 0
      %p56 = por %p54, %p55
      %p57 = scmp.ne.s32.totalorder %s46, %s49
      %p58 = scmp.eq.s32.totalorder %s29, 1
      %p59 = por %p57, %p58
      %p60 = scmp.ne.s32.totalorder %s49, %s50
      %p61 = scmp.eq.s32.totalorder %s29, 0
      %p62 = por %p60, %p61
      %p63 = scmp.ne.s32.totalorder %s49, %s50
      %p64 = scmp.eq.s32.totalorder %s30, 1
      %p65 = por %p63, %p64
      %p67 = scmp.ne.s32.totalorder %s50, %s66
      %p68 = scmp.eq.s32.totalorder %s30, 0
      %p69 = por %p67, %p68
      %s71 = sadd.s32 %s70, 1
      %p74 = scmp.eq.s32.totalorder %s24, 1
      %p75 = scmp.ne.s32.totalorder %s70, %s72
      %p76 = scmp.eq.s32.totalorder %s24, 0
      %p77 = por %p75, %p76
      %p78 = scmp.ne.s32.totalorder %s70, %s72
      %p79 = scmp.eq.s32.totalorder %s29, 1
      %p80 = por %p78, %p79
      %p81 = scmp.ne.s32.totalorder %s72, %s73
      %p82 = scmp.eq.s32.totalorder %s29, 0
      %p83 = por %p81, %p82
      %p84 = scmp.ne.s32.totalorder %s72, %s73
      %p85 = scmp.eq.s32.totalorder %s30, 1
      %p86 = por %p84, %p85
      %p88 = scmp.ne.s32.totalorder %s73, %s87
      %p89 = scmp.eq.s32.totalorder %s30, 0
      %p90 = por %p88, %p89
      %s92 = sadd.s32 %s91, 1
      %p95 = scmp.eq.s32.totalorder %s24, 1
      %p96 = scmp.ne.s32.totalorder %s91, %s93
      %p97 = scmp.eq.s32.totalorder %s24, 0
      %p98 = por %p96, %p97
      %p99 = scmp.ne.s32.totalorder %s91, %s93
      %p100 = scmp.eq.s32.totalorder %s29, 1
      %p101 = por %p99, %p100
      %p102 = scmp.ne.s32.totalorder %s93, %s94
      %p103 = scmp.eq.s32.totalorder %s29, 0
      %p104 = por %p102, %p103
      %p105 = scmp.ne.s32.totalorder %s93, %s94
      %p106 = scmp.eq.s32.totalorder %s30, 1
      %p107 = por %p105, %p106
      %p109 = scmp.ne.s32.totalorder %s94, %s108
      %p110 = scmp.eq.s32.totalorder %s30, 0
      %p111 = por %p109, %p110
      %s113 = sadd.s32 %s112, 1
      %p116 = scmp.eq.s32.totalorder %s24, 1
      %p117 = scmp.ne.s32.totalorder %s112, %s114
      %p118 = scmp.eq.s32.totalorder %s24, 0
      %p119 = por %p117, %p118
      %p120 = scmp.ne.s32.totalorder %s112, %s114
      %p121 = scmp.eq.s32.totalorder %s29, 1
      %p122 = por %p120, %p121
      %p123 = scmp.ne.s32.totalorder %s114, %s115
      %p124 = scmp.eq.s32.totalorder %s29, 0
      %p125 = por %p123, %p124
      %p126 = scmp.ne.s32.totalorder %s114, %s115
      %p127 = scmp.eq.s32.totalorder %s30, 1
      %p128 = por %p126, %p127
      %p130 = scmp.ne.s32.totalorder %s115, %s129
      %p131 = scmp.eq.s32.totalorder %s30, 0
      %p132 = por %p130, %p131
      %s134 = sadd.s32 %s133, 1
      %p137 = scmp.eq.s32.totalorder %s24, 1
      %p138 = scmp.ne.s32.totalorder %s133, %s135
      %p139 = scmp.eq.s32.totalorder %s24, 0
      %p140 = por %p138, %p139
      %p141 = scmp.ne.s32.totalorder %s133, %s135
      %p142 = scmp.eq.s32.totalorder %s29, 1
      %p143 = por %p141, %p142
      %p144 = scmp.ne.s32.totalorder %s135, %s136
      %p145 = scmp.eq.s32.totalorder %s29, 0
      %p146 = por %p144, %p145
      %p147 = scmp.ne.s32.totalorder %s135, %s136
      %p148 = scmp.eq.s32.totalorder %s30, 1
      %p149 = por %p147, %p148
      %p151 = scmp.ne.s32.totalorder %s136, %s150
      %p152 = scmp.eq.s32.totalorder %s30, 0
      %p153 = por %p151, %p152
      %s155 = sadd.s32 %s154, 1
      %p158 = scmp.eq.s32.totalorder %s24, 1
      %p159 = scmp.ne.s32.totalorder %s154, %s156
      %p160 = scmp.eq.s32.totalorder %s24, 0
      %p161 = por %p159, %p160
      %p162 = scmp.ne.s32.totalorder %s154, %s156
      %p163 = scmp.eq.s32.totalorder %s29, 1
      %p164 = por %p162, %p163
      %p165 = scmp.ne.s32.totalorder %s156, %s157
      %p166 = scmp.eq.s32.totalorder %s29, 0
      %p167 = por %p165, %p166
      %p168 = scmp.ne.s32.totalorder %s156, %s157
      %p169 = scmp.eq.s32.totalorder %s30, 1
      %p170 = por %p168, %p169
      %p172 = scmp.ne.s32.totalorder %s157, %s171
      %p173 = scmp.eq.s32.totalorder %s30, 0
      %p174 = por %p172, %p173
      %s176 = sadd.s32 %s175, 1
      %p179 = scmp.eq.s32.totalorder %s24, 1
      %p180 = scmp.ne.s32.totalorder %s175, %s177
      %p181 = scmp.eq.s32.totalorder %s24, 0
      %p182 = por %p180, %p181
      %p183 = scmp.ne.s32.totalorder %s175, %s177
      %p184 = scmp.eq.s32.totalorder %s29, 1
      %p185 = por %p183, %p184
      %p186 = scmp.ne.s32.totalorder %s177, %s178
      %p187 = scmp.eq.s32.totalorder %s29, 0
      %p188 = por %p186, %p187
      %p189 = scmp.ne.s32.totalorder %s177, %s178
      %p190 = scmp.eq.s32.totalorder %s30, 1
      %p191 = por %p189, %p190
      %p193 = scmp.ne.s32.totalorder %s178, %s192
      %p194 = scmp.eq.s32.totalorder %s30, 0
      %p195 = por %p193, %p194
      %s197 = sadd.s32 %s196, 1
      %p200 = scmp.eq.s32.totalorder %s24, 1
      %p201 = scmp.ne.s32.totalorder %s196, %s198
      %p202 = scmp.eq.s32.totalorder %s24, 0
      %p203 = por %p201, %p202
      %p204 = scmp.ne.s32.totalorder %s196, %s198
      %p205 = scmp.eq.s32.totalorder %s29, 1
      %p206 = por %p204, %p205
      %p207 = scmp.ne.s32.totalorder %s198, %s199
      %p208 = scmp.eq.s32.totalorder %s29, 0
      %p209 = por %p207, %p208
      %p210 = scmp.ne.s32.totalorder %s198, %s199
      %p211 = scmp.eq.s32.totalorder %s30, 1
      %p212 = por %p210, %p211
      %p214 = scmp.ne.s32.totalorder %s199, %s213
      %p215 = scmp.eq.s32.totalorder %s30, 0
      %p216 = por %p214, %p215
      %s218 = sadd.s32 %s217, 1
      %p221 = scmp.eq.s32.totalorder %s24, 1
      %p222 = scmp.ne.s32.totalorder %s217, %s219
      %p223 = scmp.eq.s32.totalorder %s24, 0
      %p224 = por %p222, %p223
      %p225 = scmp.ne.s32.totalorder %s217, %s219
      %p226 = scmp.eq.s32.totalorder %s29, 1
      %p227 = por %p225, %p226
      %p228 = scmp.ne.s32.totalorder %s219, %s220
      %p229 = scmp.eq.s32.totalorder %s29, 0
      %p230 = por %p228, %p229
      %p231 = scmp.ne.s32.totalorder %s219, %s220
      %p232 = scmp.eq.s32.totalorder %s30, 1
      %p233 = por %p231, %p232
      %p235 = scmp.ne.s32.totalorder %s220, %s234
      %p236 = scmp.eq.s32.totalorder %s30, 0
      %p237 = por %p235, %p236
      %s239 = sadd.s32 %s238, 1
      %p242 = scmp.eq.s32.totalorder %s24, 1
      %p243 = scmp.ne.s32.totalorder %s238, %s240
      %p244 = scmp.eq.s32.totalorder %s24, 0
      %p245 = por %p243, %p244
      %p246 = scmp.ne.s32.totalorder %s238, %s240
      %p247 = scmp.eq.s32.totalorder %s29, 1
      %p248 = por %p246, %p247
      %p249 = scmp.ne.s32.totalorder %s240, %s241
      %p250 = scmp.eq.s32.totalorder %s29, 0
      %p251 = por %p249, %p250
      %p252 = scmp.ne.s32.totalorder %s240, %s241
      %p253 = scmp.eq.s32.totalorder %s30, 1
      %p254 = por %p252, %p253
      %p256 = scmp.ne.s32.totalorder %s241, %s255
      %p257 = scmp.eq.s32.totalorder %s30, 0
      %p258 = por %p256, %p257
      %s260 = sadd.s32 %s259, 1
      %p263 = scmp.eq.s32.totalorder %s24, 1
      %p264 = scmp.ne.s32.totalorder %s259, %s261
      %p265 = scmp.eq.s32.totalorder %s24, 0
      %p266 = por %p264, %p265
      %p267 = scmp.ne.s32.totalorder %s259, %s261
      %p268 = scmp.eq.s32.totalorder %s29, 1
      %p269 = por %p267, %p268
      %p270 = scmp.ne.s32.totalorder %s261, %s262
      %p271 = scmp.eq.s32.totalorder %s29, 0
      %p272 = por %p270, %p271
      %p273 = scmp.ne.s32.totalorder %s261, %s262
      %p274 = scmp.eq.s32.totalorder %s30, 1
      %p275 = por %p273, %p274
      %p277 = scmp.ne.s32.totalorder %s262, %s276
      %p278 = scmp.eq.s32.totalorder %s30, 0
      %p279 = por %p277, %p278
      %s281 = sadd.s32 %s280, 1
      %p284 = scmp.eq.s32.totalorder %s24, 1
      %p285 = scmp.ne.s32.totalorder %s280, %s282
      %p286 = scmp.eq.s32.totalorder %s24, 0
      %p287 = por %p285, %p286
      %p288 = scmp.ne.s32.totalorder %s280, %s282
      %p289 = scmp.eq.s32.totalorder %s29, 1
      %p290 = por %p288, %p289
      %p291 = scmp.ne.s32.totalorder %s282, %s283
      %p292 = scmp.eq.s32.totalorder %s29, 0
      %p293 = por %p291, %p292
      %p294 = scmp.ne.s32.totalorder %s282, %s283
      %p295 = scmp.eq.s32.totalorder %s30, 1
      %p296 = por %p294, %p295
      %p298 = scmp.ne.s32.totalorder %s283, %s297
      %p299 = scmp.eq.s32.totalorder %s30, 0
      %p300 = por %p298, %p299
      %s302 = sadd.s32 %s301, 1
      %p305 = scmp.eq.s32.totalorder %s24, 1
      %p306 = scmp.ne.s32.totalorder %s301, %s303
      %p307 = scmp.eq.s32.totalorder %s24, 0
      %p308 = por %p306, %p307
      %p309 = scmp.ne.s32.totalorder %s301, %s303
      %p310 = scmp.eq.s32.totalorder %s29, 1
      %p311 = por %p309, %p310
      %p312 = scmp.ne.s32.totalorder %s303, %s304
      %p313 = scmp.eq.s32.totalorder %s29, 0
      %p314 = por %p312, %p313
      %p315 = scmp.ne.s32.totalorder %s303, %s304
      %p316 = scmp.eq.s32.totalorder %s30, 1
      %p317 = por %p315, %p316
      %p319 = scmp.ne.s32.totalorder %s304, %s318
      %p320 = scmp.eq.s32.totalorder %s30, 0
      %p321 = por %p319, %p320
      %s322 = ssub.s32 %s31, %s43
      %p323 = scmp.eq.s32.totalorder %s322, 0
      %s325 = sadd.s32 %s324, 1
      %s326 = scalar_select %p323, %s324, %s325
      %p329 = pneg %p323
      %p330 = scmp.eq.s32.totalorder %s24, 1
      %p331 = por %p329, %p330
      %p332 = scmp.ne.s32.totalorder %s324, %s327
      %p333 = scmp.eq.s32.totalorder %s24, 0
      %p334 = por %p332, %p333
      %p335 = scmp.ne.s32.totalorder %s324, %s327
      %p336 = scmp.eq.s32.totalorder %s29, 1
      %p337 = por %p335, %p336
      %p338 = scmp.ne.s32.totalorder %s327, %s328
      %p339 = scmp.eq.s32.totalorder %s29, 0
      %p340 = por %p338, %p339
      %p341 = scmp.ne.s32.totalorder %s327, %s328
      %p342 = scmp.eq.s32.totalorder %s30, 1
      %p343 = por %p341, %p342
      %p345 = scmp.ne.s32.totalorder %s328, %s344
      %p346 = scmp.eq.s32.totalorder %s30, 0
      %p347 = por %p345, %p346
      %p348 = scmp.le.s32.totalorder 1, %s24
      %p349 = scmp.lt.s32.totalorder %s24, 3
      %p350 = pnand %p348, %p349
      %p351 = pneg %p350
      // Predicated region
      $region9: #{tpu_custom_call.1} parent=5 // pred_check
        _
      $region10: #{tpu_custom_call.1} parent=5 // pred_check_branch
        %353 = sbr.rel (%p350) target = $region12
      $region11: #{tpu_custom_call.1} parent=5 // pred_region
        %s354 = ssub.s32 %s24, 1
        // Predicated region
        $region13: #{tpu_custom_call.1} parent=11 // pred_check
          %p355 = pneg %p83
        $region14: #{tpu_custom_call.1} parent=11 // pred_check_branch
          %357 = sbr.rel (%p355) target = $region16
        $region15: #{tpu_custom_call.1} parent=11 // pred_region
          %359 = vsyncadd [#allocation7], 0
          %s361 = sshll.u32 %s1, 4
          %s362 = int_to_ptr.hbm [resolvable:$true] %s361
          %s363 = sshll.u32 [#allocation6], 4
          %s364 = int_to_ptr.vmem [resolvable:$true] %s363
          %366 = dma.hbm_to_vmem [thread:$0]  %s362, 16, %s364, [#allocation7]
        $region16: #{tpu_custom_call.1} parent=11 // pred_fallthru
          _
        // Predicated region
        $region17: #{tpu_custom_call.1} parent=11 // pred_check
          %p367 = pneg %p104
        $region18: #{tpu_custom_call.1} parent=11 // pred_check_branch
          %369 = sbr.rel (%p367) target = $region20
        $region19: #{tpu_custom_call.1} parent=11 // pred_region
          _
        $region20: #{tpu_custom_call.1} parent=11 // pred_fallthru
          _
        // Predicated region
        $region21: #{tpu_custom_call.1} parent=11 // pred_check
          %p370 = pneg %p125
        $region22: #{tpu_custom_call.1} parent=11 // pred_check_branch
          %372 = sbr.rel (%p370) target = $region24
        $region23: #{tpu_custom_call.1} parent=11 // pred_region
          _
        $region24: #{tpu_custom_call.1} parent=11 // pred_fallthru
          _
        // Predicated region
        $region25: #{tpu_custom_call.1} parent=11 // pred_check
          %p373 = pneg %p146
        $region26: #{tpu_custom_call.1} parent=11 // pred_check_branch
          %375 = sbr.rel (%p373) target = $region28
        $region27: #{tpu_custom_call.1} parent=11 // pred_region
          _
        $region28: #{tpu_custom_call.1} parent=11 // pred_fallthru
          _
        // Predicated region
        $region29: #{tpu_custom_call.1} parent=11 // pred_check
          %p376 = pneg %p167
        $region30: #{tpu_custom_call.1} parent=11 // pred_check_branch
          %378 = sbr.rel (%p376) target = $region32
        $region31: #{tpu_custom_call.1} parent=11 // pred_region
          _
        $region32: #{tpu_custom_call.1} parent=11 // pred_fallthru
          _
        // Predicated region
        $region33: #{tpu_custom_call.1} parent=11 // pred_check
          %p379 = pneg %p188
        $region34: #{tpu_custom_call.1} parent=11 // pred_check_branch
          %381 = sbr.rel (%p379) target = $region36
        $region35: #{tpu_custom_call.1} parent=11 // pred_region
          _
        $region36: #{tpu_custom_call.1} parent=11 // pred_fallthru
          _
        // Predicated region
        $region37: #{tpu_custom_call.1} parent=11 // pred_check
          %p382 = pneg %p209
        $region38: #{tpu_custom_call.1} parent=11 // pred_check_branch
          %384 = sbr.rel (%p382) target = $region40
        $region39: #{tpu_custom_call.1} parent=11 // pred_region
          _
        $region40: #{tpu_custom_call.1} parent=11 // pred_fallthru
          _
        // Predicated region
        $region41: #{tpu_custom_call.1} parent=11 // pred_check
          %p385 = pneg %p230
        $region42: #{tpu_custom_call.1} parent=11 // pred_check_branch
          %387 = sbr.rel (%p385) target = $region44
        $region43: #{tpu_custom_call.1} parent=11 // pred_region
          _
        $region44: #{tpu_custom_call.1} parent=11 // pred_fallthru
          _
        // Predicated region
        $region45: #{tpu_custom_call.1} parent=11 // pred_check
          %p388 = pneg %p251
        $region46: #{tpu_custom_call.1} parent=11 // pred_check_branch
          %390 = sbr.rel (%p388) target = $region48
        $region47: #{tpu_custom_call.1} parent=11 // pred_region
          %392 = vsyncadd [#allocation10], 0
          %s393 = sshll.u32 %s9, 4
          %s394 = int_to_ptr.hbm [resolvable:$true] %s393
          %s395 = sshll.u32 [#allocation9], 4
          %s396 = int_to_ptr.vmem [resolvable:$true] %s395
          %401 = dma.hbm_to_vmem [thread:$0]  %s394, 256, %s396, [#allocation10], 64, 64, 4
        $region48: #{tpu_custom_call.1} parent=11 // pred_fallthru
          _
        // Predicated region
        $region49: #{tpu_custom_call.1} parent=11 // pred_check
          %p402 = pneg %p272
        $region50: #{tpu_custom_call.1} parent=11 // pred_check_branch
          %404 = sbr.rel (%p402) target = $region52
        $region51: #{tpu_custom_call.1} parent=11 // pred_region
          _
        $region52: #{tpu_custom_call.1} parent=11 // pred_fallthru
          _
        // Predicated region
        $region53: #{tpu_custom_call.1} parent=11 // pred_check
          %p405 = pneg %p293
        $region54: #{tpu_custom_call.1} parent=11 // pred_check_branch
          %407 = sbr.rel (%p405) target = $region56
        $region55: #{tpu_custom_call.1} parent=11 // pred_region
          _
        $region56: #{tpu_custom_call.1} parent=11 // pred_fallthru
          _
        // Predicated region
        $region57: #{tpu_custom_call.1} parent=11 // pred_check
          %p408 = pneg %p314
        $region58: #{tpu_custom_call.1} parent=11 // pred_check_branch
          %410 = sbr.rel (%p408) target = $region60
        $region59: #{tpu_custom_call.1} parent=11 // pred_region
          _
        $region60: #{tpu_custom_call.1} parent=11 // pred_fallthru
          _
      $region12: #{tpu_custom_call.1} parent=5 // pred_fallthru
        _
      %p411 = scmp.lt.s32.totalorder %s24, 2
      // Predicated region
      $region61: #{tpu_custom_call.1} parent=5 // pred_check
        %p412 = pneg %p411
      $region62: #{tpu_custom_call.1} parent=5 // pred_check_branch
        %414 = sbr.rel (%p412) target = $region64
      $region63: #{tpu_custom_call.1} parent=5 // pred_region
        // Predicated region
        $region65: #{tpu_custom_call.1} parent=63 // pred_check
          %p415 = pneg %p56
        $region66: #{tpu_custom_call.1} parent=63 // pred_check_branch
          %417 = sbr.rel (%p415) target = $region68
        $region67: #{tpu_custom_call.1} parent=63 // pred_region
          %p418 = scmp.lt.s32.totalorder %s31, 1
          %s419 = scalar_select %p418, %s31, 1
          %s420 = smul.addr %s419, 8
          %s421 = scalar_lea.vmem %s0, %s420
        $region68: #{tpu_custom_call.1} parent=63 // pred_fallthru
          _
      $region64: #{tpu_custom_call.1} parent=5 // pred_fallthru
        _
      %p422 = scmp.le.s32.totalorder 1, %s24
      %p423 = scmp.lt.s32.totalorder %s24, 3
      %p424 = pnand %p422, %p423
      %p425 = pneg %p424
      // Predicated region
      $region69: #{tpu_custom_call.1} parent=5 // pred_check
        _
      $region70: #{tpu_custom_call.1} parent=5 // pred_check_branch
        %427 = sbr.rel (%p424) target = $region72
      $region71: #{tpu_custom_call.1} parent=5 // pred_region
        %s428 = ssub.s32 %s24, 1
        // Predicated region
        $region73: #{tpu_custom_call.1} parent=71 // pred_check
          %p429 = pneg %p83
        $region74: #{tpu_custom_call.1} parent=71 // pred_check_branch
          %431 = sbr.rel (%p429) target = $region76
        $region75: #{tpu_custom_call.1} parent=71 // pred_region
          %433 = dma.done [#allocation7], 16
        $region76: #{tpu_custom_call.1} parent=71 // pred_fallthru
          _
        // Predicated region
        $region77: #{tpu_custom_call.1} parent=71 // pred_check
          %p434 = pneg %p251
        $region78: #{tpu_custom_call.1} parent=71 // pred_check_branch
          %436 = sbr.rel (%p434) target = $region80
        $region79: #{tpu_custom_call.1} parent=71 // pred_region
          %438 = dma.done [#allocation10], 256
        $region80: #{tpu_custom_call.1} parent=71 // pred_fallthru
          _
        %p439 = scmp.lt.s32.totalorder %s33, 1
        %s440 = scalar_select %p439, %s33, 1
        %s441 = smul.addr %s440, 8
        %s442 = scalar_lea.vmem %s0, %s441
        %p443 = pneg %p62
        %p444 = pneg %p59
        %p445 = pneg %p83
        %p446 = pneg %p80
        %p447 = pneg %p104
        %p448 = pneg %p101
        %p449 = pneg %p125
        %p450 = pneg %p122
        %p451 = pneg %p146
        %p452 = pneg %p143
        %p453 = pneg %p167
        %p454 = pneg %p164
        %p455 = pneg %p188
        %p456 = pneg %p185
        %p457 = pneg %p209
        %p458 = pneg %p206
        %p459 = pneg %p230
        %p460 = pneg %p227
        %p461 = pneg %p251
        %p462 = pneg %p248
        %p463 = pneg %p272
        %p464 = pneg %p269
        %p465 = pneg %p293
        %p466 = pneg %p290
        %p467 = pneg %p314
        %p468 = pneg %p311
        %p469 = pneg %p340
        %p470 = pneg %p337
        %s471 = sand.u32 %s327, 1
        %s472 = scalar_lea.sflag [#allocation8], %s471
        %s473 = sand.u32 %s327, 1
        %s474 = smul.addr %s473, 8
        %s475 = scalar_lea.vmem [#allocation11], %s474
        %p476 = scmp.lt.s32.totalorder %s33, 1
        %s477 = scalar_select %p476, %s33, 1
        %s478 = smul.addr %s477, 8
        %s479 = scalar_lea.vmem %s0, %s478
        %p481 = scmp.eq.s32.totalorder %s34, 0
        // Predicated region
        $region81: #{tpu_custom_call.1} parent=71 // pred_check
          %p482 = pneg %p481
        $region82: #{tpu_custom_call.1} parent=71 // pred_check_branch
          %484 = sbr.rel (%p482) target = $region84
        $region83: #{tpu_custom_call.1} parent=71 // pred_region
          %v485 = vld [vmem:[%s479] sm:$0xff]
          %v486 = vld [vmem:[#allocation6] sm:$0x1]
          %v487 = vld [vmem:[%s2] sm:$0x1]
          %vm488 = vcmask 261120
          %v489 = vsel %vm488, %v485, 0.0
          %490 = vadd.xlane.f32.xlu0 %v489
          %v491 = vpop.xlane.xlu0 %490
          %v492 = vrcp.pop 32.0
          %v493 = vmul.f32 32.0, %v492
          %v494 = vsub.f32 1.0, %v493
          %v495 = vmul.f32 %v492, %v494
          %v496 = vadd.f32 %v492, %v495
          %vm497 = vweird.f32 %v492
          %v498 = vsel %vm497, %v492, %v496
          %v499 = vmul.f32 %v491, %v498
          %v500 = vsub.f32 %v485, %v499
          %v501 = vmul.f32 %v500, %v500
          %v502 = vsel %vm488, %v501, 0.0
          %503 = vadd.xlane.f32.xlu0 %v502
          %v504 = vpop.xlane.xlu0 %503
          %v505 = vmul.f32 %v504, %v498
          %v506 = vadd.f32 %v505, 1e-05
          %v507 = vrsqrt.pop %v506
          %v508 = vmul.f32 %v507, %v506
          %v509 = vmul.f32 %v508, %v507
          %v510 = vmul.f32 0.5, %v509
          %v511 = vsub.f32 1.5, %v510
          %v512 = vmul.f32 %v507, %v511
          %vm513 = vweird.f32 %v506
          %vm514 = vweird.f32 %v507
          %vm515 = vmor %vm513, %vm514
          %v516 = vsel %vm515, %v507, %v512
          %v517 = vmul.f32 %v500, %v516
          %v519 = vperm.slane %v486, 0
          %v521 = vmul.f32 %v517, %v519
          %v523 = vperm.slane %v487, 0
          %v525 = vadd.f32 %v521, %v523
          %v526 = vpack.c.bf16 %v525, %v525
          %v527 = vld [vmem:[%s3] sm:$0xf]
          %v528 = vld [vmem:[%s3 + $0x4] sm:$0xf]
          %v529 = vld [vmem:[%s3 + $0x8] sm:$0xf]
          %v530 = vld [vmem:[%s3 + $0xc] sm:$0xf]
          %v531 = vld [vmem:[%s4] sm:$0x1]
          %v533 = vperm.slane %v531, 0
          %v539 = vunpack.c.l.b16 %v527
          %v540 = vunpack.c.l.b16 %v528
          %v541 = vunpack.c.l.b16 %v529
          %v542 = vunpack.c.l.b16 %v530
          %v543 = vpack.c.b16 %v540, %v539
          %v544 = vpack.c.b16 %v542, %v541
          %v548 = vsel %vm488, %v526, 0
          %550 = vmatpush.bf16.msra.mxu0 0
          %551 = vmatpush.bf16.msra.mxu0 0
          %552 = vmatpush.bf16.msra.mxu0 0
          %553 = vmatpush.bf16.msra.mxu0 0
          %554 = vmatpush.bf16.msra.mxu0 0
          %555 = vmatpush.bf16.msra.mxu0 0
          %556 = vmatpush.bf16.msra.mxu0 %v544
          %557 = vmatpush.bf16.msra.mxu0 %v543
          %558 = vmatmul.bf16.gmra.mxu0 %v548
          %v559 = vpop.f32.mrf.mxu0
          %v560 = vadd.f32 %v533, %v559
          %v561 = vpop.f32.mrf.mxu0
          %562 = vdwg.mxu0
          %v563 = vmax.f32 %v560, 0.0
          %565 = vrot.lane.b32.xlu0 %v563, 120
          %v566 = vpop.permute.xlu0 %565
          %568 = vrot.lane.b32.xlu0 %v563, 112
          %v569 = vpop.permute.xlu0 %568
          %571 = vrot.lane.b32.xlu0 %v563, 104
          %v572 = vpop.permute.xlu0 %571
          %v574 = vpack.c.bf16 %v563, %v563
          %v575 = vpack.c.bf16 %v566, %v566
          %v576 = vpack.c.bf16 %v569, %v569
          %v577 = vpack.c.bf16 %v572, %v572
          %vm578 = vcmask 60416
          %579 = vst.msk [vmem:[#allocation2] sm:$0xf] %vm578, %v574
          %580 = vst.msk [vmem:[#allocation2 + $0x4] sm:$0xf] %vm578, %v575
          %581 = vst.msk [vmem:[#allocation2 + $0x8] sm:$0xf] %vm578, %v576
          %582 = vst.msk [vmem:[#allocation2 + $0xc] sm:$0xf] %vm578, %v577
          %587 = vrot.lane.b32.xlu0 %v574, 96
          %v588 = vpop.permute.xlu0 %587
          %589 = vrot.lane.b32.xlu0 %v575, 96
          %v590 = vpop.permute.xlu0 %589
          %591 = vrot.lane.b32.xlu0 %v576, 96
          %v592 = vpop.permute.xlu0 %591
          %593 = vrot.lane.b32.xlu0 %v577, 96
          %v594 = vpop.permute.xlu0 %593
          %599 = vst.msk [vmem:[#allocation3] sm:$0xf] %vm578, %v588
          %600 = vst.msk [vmem:[#allocation3 + $0x4] sm:$0xf] %vm578, %v590
          %601 = vst.msk [vmem:[#allocation3 + $0x8] sm:$0xf] %vm578, %v592
          %602 = vst.msk [vmem:[#allocation3 + $0xc] sm:$0xf] %vm578, %v594
          %603 = vrot.lane.b32.xlu0 %v574, 64
          %v604 = vpop.permute.xlu0 %603
          %605 = vrot.lane.b32.xlu0 %v575, 64
          %v606 = vpop.permute.xlu0 %605
          %607 = vrot.lane.b32.xlu0 %v576, 64
          %v608 = vpop.permute.xlu0 %607
          %609 = vrot.lane.b32.xlu0 %v577, 64
          %v610 = vpop.permute.xlu0 %609
          %615 = vst.msk [vmem:[#allocation4] sm:$0xf] %vm578, %v604
          %616 = vst.msk [vmem:[#allocation4 + $0x4] sm:$0xf] %vm578, %v606
          %617 = vst.msk [vmem:[#allocation4 + $0x8] sm:$0xf] %vm578, %v608
          %618 = vst.msk [vmem:[#allocation4 + $0xc] sm:$0xf] %vm578, %v610
          %vm619 = vcmask 64512
          %620 = vst.msk [vmem:[#allocation5] sm:$0xff] %vm619, 0.0
          %621 = vst.msk [vmem:[#allocation5 + $0x8] sm:$0xff] %vm619, 0.0
          %622 = vst.msk [vmem:[#allocation5 + $0x10] sm:$0xff] %vm619, 0.0
          %623 = vst.msk [vmem:[#allocation5 + $0x18] sm:$0xff] %vm619, 0.0
        $region84: #{tpu_custom_call.1} parent=71 // pred_fallthru
          _
        %s624 = smul.u32 %s34, 8
        %s625 = sshra.s32 %s624, 3
        %s626 = sand.u32 %s624, 7
        %s627 = smul.addr %s625, 4
        %s628 = scalar_lea.vmem [#allocation3], %s627
        %v629 = vld [vmem:[%s628] sm:$0xf]
        %v630 = vld [vmem:[%s628 + $0x4] sm:$0xf]
        %v631 = vld [vmem:[%s628 + $0x8] sm:$0xf]
        %v632 = vld [vmem:[%s628 + $0xc] sm:$0xf]
        %s633 = smul.addr %s625, 4
        %s634 = scalar_lea.vmem [#allocation4], %s633
        %v635 = vld [vmem:[%s634] sm:$0xf]
        %v636 = vld [vmem:[%s634 + $0x4] sm:$0xf]
        %v637 = vld [vmem:[%s634 + $0x8] sm:$0xf]
        %v638 = vld [vmem:[%s634 + $0xc] sm:$0xf]
        %v639 = vld [vmem:[#allocation2] sm:$0xf]
        %v640 = vld [vmem:[#allocation2 + $0x4] sm:$0xf]
        %v641 = vld [vmem:[#allocation2 + $0x8] sm:$0xf]
        %v642 = vld [vmem:[#allocation2 + $0xc] sm:$0xf]
        %vm643 = vcmask 64512
        %v645 = vsel %vm643, %v639, 0
        %v648 = vsel %vm643, %v629, 0
        %650 = vmatpush.bf16.xpose.msra.mxu0 0
        %651 = vmatpush.bf16.xpose.msra.mxu0 0
        %652 = vmatpush.bf16.xpose.msra.mxu0 0
        %653 = vmatpush.bf16.xpose.msra.mxu0 0
        %654 = vmatpush.bf16.xpose.msra.mxu0 0
        %655 = vmatpush.bf16.xpose.msra.mxu0 0
        %656 = vmatpush.bf16.xpose.msra.mxu0 0
        %657 = vmatpush.bf16.xpose.msra.mxu0 %v648
        %658 = vmatmul.bf16.gmra.mxu0 %v645
        %v659 = vpop.f32.mrf.mxu0
        %v660 = vadd.f32 0.0, %v659
        %v661 = vpop.f32.mrf.mxu0
        %662 = vdwg.mxu0
        %v664 = vsel %vm643, %v640, 0
        %v667 = vsel %vm643, %v630, 0
        %669 = vmatpush.bf16.xpose.msra.mxu0 0
        %670 = vmatpush.bf16.xpose.msra.mxu0 0
        %671 = vmatpush.bf16.xpose.msra.mxu0 0
        %672 = vmatpush.bf16.xpose.msra.mxu0 0
        %673 = vmatpush.bf16.xpose.msra.mxu0 0
        %674 = vmatpush.bf16.xpose.msra.mxu0 0
        %675 = vmatpush.bf16.xpose.msra.mxu0 0
        %676 = vmatpush.bf16.xpose.msra.mxu0 %v667
        %677 = vmatmul.bf16.gmra.mxu0 %v664
        %v678 = vpop.f32.mrf.mxu0
        %v679 = vadd.f32 0.0, %v678
        %v680 = vpop.f32.mrf.mxu0
        %681 = vdwg.mxu0
        %v683 = vsel %vm643, %v641, 0
        %v686 = vsel %vm643, %v631, 0
        %688 = vmatpush.bf16.xpose.msra.mxu0 0
        %689 = vmatpush.bf16.xpose.msra.mxu0 0
        %690 = vmatpush.bf16.xpose.msra.mxu0 0
        %691 = vmatpush.bf16.xpose.msra.mxu0 0
        %692 = vmatpush.bf16.xpose.msra.mxu0 0
        %693 = vmatpush.bf16.xpose.msra.mxu0 0
        %694 = vmatpush.bf16.xpose.msra.mxu0 0
        %695 = vmatpush.bf16.xpose.msra.mxu0 %v686
        %696 = vmatmul.bf16.gmra.mxu0 %v683
        %v697 = vpop.f32.mrf.mxu0
        %v698 = vadd.f32 0.0, %v697
        %v699 = vpop.f32.mrf.mxu0
        %700 = vdwg.mxu0
        %v702 = vsel %vm643, %v642, 0
        %v705 = vsel %vm643, %v632, 0
        %707 = vmatpush.bf16.xpose.msra.mxu0 0
        %708 = vmatpush.bf16.xpose.msra.mxu0 0
        %709 = vmatpush.bf16.xpose.msra.mxu0 0
        %710 = vmatpush.bf16.xpose.msra.mxu0 0
        %711 = vmatpush.bf16.xpose.msra.mxu0 0
        %712 = vmatpush.bf16.xpose.msra.mxu0 0
        %713 = vmatpush.bf16.xpose.msra.mxu0 0
        %714 = vmatpush.bf16.xpose.msra.mxu0 %v705
        %715 = vmatmul.bf16.gmra.mxu0 %v702
        %v716 = vpop.f32.mrf.mxu0
        %v717 = vadd.f32 0.0, %v716
        %v718 = vpop.f32.mrf.mxu0
        %719 = vdwg.mxu0
        %v720 = vlaneseq
        %v721 = vshrl.u32 %v720, 7
        %v722 = vlaneseq
        %v723 = vand.u32 %v722, 127
        %v724 = vstv %s624
        %v725 = vadd.s32 %v723, %v724
        %vm726 = vcmp.ge.s32.totalorder %v721, %v725
        %v727 = vsel %vm726, 1, 0
        %v728 = vcvt.s32.f32 %v727
        %v729 = vmax.f32 %v660, 0.0
        %v730 = vmax.f32 %v679, 0.0
        %v731 = vmax.f32 %v698, 0.0
        %v732 = vmax.f32 %v717, 0.0
        %v733 = vmul.f32 %v729, %v728
        %v734 = vmul.f32 %v730, %v728
        %v735 = vmul.f32 %v731, %v728
        %v736 = vmul.f32 %v732, %v728
        %v737 = vld [vmem:[#allocation5] sm:$0xff]
        %v738 = vld [vmem:[#allocation5 + $0x8] sm:$0xff]
        %v739 = vld [vmem:[#allocation5 + $0x10] sm:$0xff]
        %v740 = vld [vmem:[#allocation5 + $0x18] sm:$0xff]
        %v741 = vpack.c.bf16 %v733, %v733
        %v742 = vpack.c.bf16 %v734, %v734
        %v743 = vpack.c.bf16 %v735, %v735
        %v744 = vpack.c.bf16 %v736, %v736
        %v746 = vsel %vm643, %v741, 0
        %vm748 = vcmask 1043456
        %v750 = vsel %vm748, %v635, 0
        %752 = vmatpush.bf16.msra.mxu0 0
        %753 = vmatpush.bf16.msra.mxu0 0
        %754 = vmatpush.bf16.msra.mxu0 0
        %755 = vmatpush.bf16.msra.mxu0 0
        %756 = vmatpush.bf16.msra.mxu0 0
        %757 = vmatpush.bf16.msra.mxu0 0
        %758 = vmatpush.bf16.msra.mxu0 0
        %759 = vmatpush.bf16.msra.mxu0 %v750
        %760 = vmatmul.bf16.gmra.mxu0 %v746
        %v761 = vpop.f32.mrf.mxu0
        %v762 = vadd.f32 0.0, %v761
        %v763 = vpop.f32.mrf.mxu0
        %764 = vdwg.mxu0
        %v766 = vsel %vm643, %v742, 0
        %v769 = vsel %vm748, %v636, 0
        %771 = vmatpush.bf16.msra.mxu0 0
        %772 = vmatpush.bf16.msra.mxu0 0
        %773 = vmatpush.bf16.msra.mxu0 0
        %774 = vmatpush.bf16.msra.mxu0 0
        %775 = vmatpush.bf16.msra.mxu0 0
        %776 = vmatpush.bf16.msra.mxu0 0
        %777 = vmatpush.bf16.msra.mxu0 0
        %778 = vmatpush.bf16.msra.mxu0 %v769
        %779 = vmatmul.bf16.gmra.mxu0 %v766
        %v780 = vpop.f32.mrf.mxu0
        %v781 = vadd.f32 0.0, %v780
        %v782 = vpop.f32.mrf.mxu0
        %783 = vdwg.mxu0
        %v785 = vsel %vm643, %v743, 0
        %v788 = vsel %vm748, %v637, 0
        %790 = vmatpush.bf16.msra.mxu0 0
        %791 = vmatpush.bf16.msra.mxu0 0
        %792 = vmatpush.bf16.msra.mxu0 0
        %793 = vmatpush.bf16.msra.mxu0 0
        %794 = vmatpush.bf16.msra.mxu0 0
        %795 = vmatpush.bf16.msra.mxu0 0
        %796 = vmatpush.bf16.msra.mxu0 0
        %797 = vmatpush.bf16.msra.mxu0 %v788
        %798 = vmatmul.bf16.gmra.mxu0 %v785
        %v799 = vpop.f32.mrf.mxu0
        %v800 = vadd.f32 0.0, %v799
        %v801 = vpop.f32.mrf.mxu0
        %802 = vdwg.mxu0
        %v804 = vsel %vm643, %v744, 0
        %v807 = vsel %vm748, %v638, 0
        %809 = vmatpush.bf16.msra.mxu0 0
        %810 = vmatpush.bf16.msra.mxu0 0
        %811 = vmatpush.bf16.msra.mxu0 0
        %812 = vmatpush.bf16.msra.mxu0 0
        %813 = vmatpush.bf16.msra.mxu0 0
        %814 = vmatpush.bf16.msra.mxu0 0
        %815 = vmatpush.bf16.msra.mxu0 0
        %816 = vmatpush.bf16.msra.mxu0 %v807
        %817 = vmatmul.bf16.gmra.mxu0 %v804
        %v818 = vpop.f32.mrf.mxu0
        %v819 = vadd.f32 0.0, %v818
        %v820 = vpop.f32.mrf.mxu0
        %821 = vdwg.mxu0
        %v822 = vadd.f32 %v737, %v762
        %v823 = vadd.f32 %v738, %v781
        %v824 = vadd.f32 %v739, %v800
        %v825 = vadd.f32 %v740, %v819
        %826 = vst.msk [vmem:[#allocation5] sm:$0xff] %vm643, %v822
        %827 = vst.msk [vmem:[#allocation5 + $0x8] sm:$0xff] %vm643, %v823
        %828 = vst.msk [vmem:[#allocation5 + $0x10] sm:$0xff] %vm643, %v824
        %829 = vst.msk [vmem:[#allocation5 + $0x18] sm:$0xff] %vm643, %v825
        // Predicated region
        $region85: #{tpu_custom_call.1} parent=71 // pred_check
          %p830 = pneg %p481
        $region86: #{tpu_custom_call.1} parent=71 // pred_check_branch
          %832 = sbr.rel (%p830) target = $region88
        $region87: #{tpu_custom_call.1} parent=71 // pred_region
          %v833 = vld [vmem:[#allocation5] sm:$0xff]
          %s834 = scalar_lea.vmem [#allocation5], 8
          %v835 = vld [vmem:[%s834] sm:$0xff]
          %s836 = scalar_lea.vmem [#allocation5], 16
          %v837 = vld [vmem:[%s836] sm:$0xff]
          %s838 = scalar_lea.vmem [#allocation5], 24
          %v839 = vld [vmem:[%s838] sm:$0xff]
          %841 = vrot.lane.b32.xlu0 %v835, 8
          %v842 = vpop.permute.xlu0 %841
          %845 = vrot.lane.b32.xlu0 %v837, 16
          %v846 = vpop.permute.xlu0 %845
          %849 = vrot.lane.b32.xlu0 %v839, 24
          %v850 = vpop.permute.xlu0 %849
          %v852 = vsel %vm643, %v833, %v842
          %vm853 = vcmask 130048
          %v854 = vsel %vm853, %v852, %v846
          %vm855 = vcmask 195584
          %v856 = vsel %vm855, %v854, %v850
          %v857 = vpack.c.bf16 %v856, %v856
          %v858 = vld [vmem:[%s5] sm:$0xf]
          %v859 = vld [vmem:[%s5 + $0x4] sm:$0xf]
          %v860 = vld [vmem:[%s5 + $0x8] sm:$0xf]
          %v861 = vld [vmem:[%s5 + $0xc] sm:$0xf]
          %v862 = vld [vmem:[%s6] sm:$0x1]
          %v864 = vperm.slane %v862, 0
          %v870 = vunpack.c.l.b16 %v858
          %v871 = vunpack.c.l.b16 %v859
          %v872 = vunpack.c.l.b16 %v860
          %v873 = vunpack.c.l.b16 %v861
          %v874 = vpack.c.b16 %v871, %v870
          %v875 = vpack.c.b16 %v873, %v872
          %vm878 = vcmask 261120
          %v880 = vsel %vm878, %v857, 0
          %882 = vmatpush.bf16.msra.mxu0 0
          %883 = vmatpush.bf16.msra.mxu0 0
          %884 = vmatpush.bf16.msra.mxu0 0
          %885 = vmatpush.bf16.msra.mxu0 0
          %886 = vmatpush.bf16.msra.mxu0 0
          %887 = vmatpush.bf16.msra.mxu0 0
          %888 = vmatpush.bf16.msra.mxu0 %v875
          %889 = vmatpush.bf16.msra.mxu0 %v874
          %890 = vmatmul.bf16.gmra.mxu0 %v880
          %v891 = vpop.f32.mrf.mxu0
          %v892 = vadd.f32 %v864, %v891
          %v893 = vpop.f32.mrf.mxu0
          %894 = vdwg.mxu0
          %v895 = vld [vmem:[%s479] sm:$0xff]
          %v896 = vadd.f32 %v895, %v892
          %v897 = vld [vmem:[%s7] sm:$0x1]
          %v898 = vld [vmem:[%s8] sm:$0x1]
          %v899 = vsel %vm878, %v896, 0.0
          %900 = vadd.xlane.f32.xlu0 %v899
          %v901 = vpop.xlane.xlu0 %900
          %v902 = vrcp.pop 32.0
          %v903 = vmul.f32 32.0, %v902
          %v904 = vsub.f32 1.0, %v903
          %v905 = vmul.f32 %v902, %v904
          %v906 = vadd.f32 %v902, %v905
          %vm907 = vweird.f32 %v902
          %v908 = vsel %vm907, %v902, %v906
          %v909 = vmul.f32 %v901, %v908
          %v910 = vsub.f32 %v896, %v909
          %v911 = vmul.f32 %v910, %v910
          %v912 = vsel %vm878, %v911, 0.0
          %913 = vadd.xlane.f32.xlu0 %v912
          %v914 = vpop.xlane.xlu0 %913
          %v915 = vmul.f32 %v914, %v908
          %v916 = vadd.f32 %v915, 1e-05
          %v917 = vrsqrt.pop %v916
          %v918 = vmul.f32 %v917, %v916
          %v919 = vmul.f32 %v918, %v917
          %v920 = vmul.f32 0.5, %v919
          %v921 = vsub.f32 1.5, %v920
          %v922 = vmul.f32 %v917, %v921
          %vm923 = vweird.f32 %v916
          %vm924 = vweird.f32 %v917
          %vm925 = vmor %vm923, %vm924
          %v926 = vsel %vm925, %v917, %v922
          %v927 = vmul.f32 %v910, %v926
          %v929 = vperm.slane %v897, 0
          %v931 = vmul.f32 %v927, %v929
          %v933 = vperm.slane %v898, 0
          %v935 = vadd.f32 %v931, %v933
          %v936 = vpack.c.bf16 %v935, %v935
          %v937 = vld [vmem:[#allocation9] sm:$0xf]
          %v938 = vld [vmem:[#allocation9 + $0x4] sm:$0xf]
          %v939 = vld [vmem:[#allocation9 + $0x8] sm:$0xf]
          %v940 = vld [vmem:[#allocation9 + $0xc] sm:$0xf]
          %v941 = vld [vmem:[%s10] sm:$0x1]
          %v943 = vperm.slane %v941, 0
          %v949 = vunpack.c.l.b16 %v937
          %v950 = vunpack.c.l.b16 %v938
          %v951 = vunpack.c.l.b16 %v939
          %v952 = vunpack.c.l.b16 %v940
          %v953 = vpack.c.b16 %v950, %v949
          %v954 = vpack.c.b16 %v952, %v951
          %v958 = vsel %vm878, %v936, 0
          %960 = vmatpush.bf16.msra.mxu0 0
          %961 = vmatpush.bf16.msra.mxu0 0
          %962 = vmatpush.bf16.msra.mxu0 0
          %963 = vmatpush.bf16.msra.mxu0 0
          %964 = vmatpush.bf16.msra.mxu0 0
          %965 = vmatpush.bf16.msra.mxu0 0
          %966 = vmatpush.bf16.msra.mxu0 %v954
          %967 = vmatpush.bf16.msra.mxu0 %v953
          %968 = vmatmul.bf16.gmra.mxu0 %v958
          %v969 = vpop.f32.mrf.mxu0
          %v970 = vadd.f32 %v943, %v969
          %v971 = vpop.f32.mrf.mxu0
          %972 = vdwg.mxu0
          %v973 = vmax.f32 %v970, 0.0
          %v974 = vpack.c.bf16 %v973, %v973
          %v975 = vld [vmem:[%s11] sm:$0xf]
          %v976 = vld [vmem:[%s11 + $0x4] sm:$0xf]
          %v977 = vld [vmem:[%s11 + $0x8] sm:$0xf]
          %v978 = vld [vmem:[%s11 + $0xc] sm:$0xf]
          %v979 = vld [vmem:[%s11 + $0x10] sm:$0xf]
          %v980 = vld [vmem:[%s11 + $0x14] sm:$0xf]
          %v981 = vld [vmem:[%s11 + $0x18] sm:$0xf]
          %v982 = vld [vmem:[%s11 + $0x1c] sm:$0xf]
          %v983 = vld [vmem:[%s12] sm:$0x1]
          %v985 = vperm.slane %v983, 0
          %v995 = vunpack.c.l.b16 %v975
          %v996 = vunpack.c.l.b16 %v976
          %v997 = vunpack.c.l.b16 %v977
          %v998 = vunpack.c.l.b16 %v978
          %v999 = vunpack.c.l.b16 %v979
          %v1000 = vunpack.c.l.b16 %v980
          %v1001 = vunpack.c.l.b16 %v981
          %v1002 = vunpack.c.l.b16 %v982
          %v1003 = vpack.c.b16 %v996, %v995
          %v1004 = vpack.c.b16 %v998, %v997
          %v1005 = vpack.c.b16 %v1000, %v999
          %v1006 = vpack.c.b16 %v1002, %v1001
          %vm1011 = vcmask 523264
          %v1013 = vsel %vm1011, %v974, 0
          %1015 = vmatpush.bf16.msra.mxu0 0
          %1016 = vmatpush.bf16.msra.mxu0 0
          %1017 = vmatpush.bf16.msra.mxu0 0
          %1018 = vmatpush.bf16.msra.mxu0 0
          %1019 = vmatpush.bf16.msra.mxu0 %v1006
          %1020 = vmatpush.bf16.msra.mxu0 %v1005
          %1021 = vmatpush.bf16.msra.mxu0 %v1004
          %1022 = vmatpush.bf16.msra.mxu0 %v1003
          %1023 = vmatmul.bf16.gmra.mxu0 %v1013
          %v1024 = vpop.f32.mrf.mxu0
          %v1025 = vadd.f32 %v985, %v1024
          %v1026 = vpop.f32.mrf.mxu0
          %1027 = vdwg.mxu0
          %v1028 = vadd.f32 %v896, %v1025
          %1029 = vst.msk [vmem:[%s475] sm:$0xff] %vm878, %v1028
        $region88: #{tpu_custom_call.1} parent=71 // pred_fallthru
          _
        %s1030 = sand.u32 %s327, 1
        %s1031 = scalar_lea.sflag [#allocation8], %s1030
        %s1032 = sand.u32 %s327, 1
        %s1033 = smul.addr %s1032, 8
        %s1034 = scalar_lea.vmem [#allocation11], %s1033
        // Predicated region
        $region89: #{tpu_custom_call.1} parent=71 // pred_check
          %p1035 = pneg %p337
        $region90: #{tpu_custom_call.1} parent=71 // pred_check_branch
          %1037 = sbr.rel (%p1035) target = $region92
        $region91: #{tpu_custom_call.1} parent=71 // pred_region
          %1039 = vsyncadd %s1031, 0
          %s1040 = smul.addr %s33, 8
          %s1041 = scalar_lea.hbm %s13, %s1040
          %s1043 = sshll.u32 %s1034, 4
          %s1044 = int_to_ptr.vmem [resolvable:$true] %s1043
          %s1045 = sshll.u32 %s1041, 4
          %s1046 = int_to_ptr.hbm [resolvable:$true] %s1045
          %1048 = dma.vmem_to_hbm [thread:$0]  %s1044, 128, %s1046, %s1031
        $region92: #{tpu_custom_call.1} parent=71 // pred_fallthru
          _
      $region72: #{tpu_custom_call.1} parent=5 // pred_fallthru
        _
      %p1049 = scmp.le.s32.totalorder 2, %s24
      // Predicated region
      $region93: #{tpu_custom_call.1} parent=5 // pred_check
        %p1050 = pneg %p1049
      $region94: #{tpu_custom_call.1} parent=5 // pred_check_branch
        %1052 = sbr.rel (%p1050) target = $region96
      $region95: #{tpu_custom_call.1} parent=5 // pred_region
        %s1053 = ssub.s32 %s24, 2
        // Predicated region
        $region97: #{tpu_custom_call.1} parent=95 // pred_check
          %p1054 = pneg %p343
        $region98: #{tpu_custom_call.1} parent=95 // pred_check_branch
          %1056 = sbr.rel (%p1054) target = $region100
        $region99: #{tpu_custom_call.1} parent=95 // pred_region
          %s1057 = sand.u32 %s328, 1
          %s1058 = scalar_lea.sflag [#allocation8], %s1057
          %s1059 = sand.u32 %s328, 1
          %s1060 = smul.addr %s1059, 8
          %s1061 = scalar_lea.vmem [#allocation11], %s1060
          %1063 = dma.done %s1058, 128
        $region100: #{tpu_custom_call.1} parent=95 // pred_fallthru
          _
      $region96: #{tpu_custom_call.1} parent=5 // pred_fallthru
        _
    $region6: #{tpu_custom_call.1} parent=1 // loop_footer
      %s28 = sadd.s32 1, %s24
    $region7: #{tpu_custom_call.1} parent=1 // loop_footer_branch
      %23 = sbr.rel target = $region3
    $region8: #{tpu_custom_call.1} parent=1 // loop_exit
      _
    %1064 = vsyncpa [#allocation7], 1
    %s1065 = scalar_lea.sflag [#allocation7], 1
    %1066 = vsyncpa %s1065, 1
    %1067 = vsyncpa [#allocation10], 1
    %1068 = vsyncpa [#allocation8], 1
    %s1069 = scalar_lea.sflag [#allocation8], 1
    %1070 = vsyncpa %s1069, 1

</llo_original>
